<compile_context>
chip_gen: v7x
topology: tpu7x:2x2x1
jax: 0.10.0
libtpu: 0.0.40
codegen_flags: <defaults>
</compile_context>

<pallas_src>
import functools

import jax
import jax.numpy as jnp
from jax.experimental import pallas as pl
from jax.experimental.pallas import tpu as pltpu


LANE = 128  # pad feature dims (and N) to multiples of this for lane density


# ----------------------------------------------------------------------------
# Kernel: grid = (layer, k-step, row-strip)
#   k == 0          : strip-local linear  h = x @ W + b  (layer 0: x, layer 1:
#                     final layer-0 output), stores h and coef_res*h.
#   k in 1..K       : one propagation step for this strip:
#                     out[strip] = coef_prop * adj[strip,:] @ out_prev + res[strip]
#   (layer==1, k==K): row-wise log_softmax over valid classes, store output.
# ----------------------------------------------------------------------------
def _net_kernel(x_ref, adj_ref, w1_ref, b1_ref, w2_ref, b2_ref, o_ref,
                out_a, out_b, hres, *, alpha, K, n_classes, tm):
    l = pl.program_id(0)          # 0 -> conv1, 1 -> conv2
    k = pl.program_id(1)          # 0 -> linear, 1..K -> propagation steps
    i = pl.program_id(2)          # row strip index

    coef_prop = jnp.float32(alpha / (1.0 + alpha))
    coef_res = jnp.float32(1.0 / (1.0 + alpha))

    row0 = pl.multiple_of(i * tm, tm)
    rows = pl.ds(row0, tm)

    # ping-pong schedule is static in K: layer-1 result ends in out_a iff K even
    l1_final = out_a if (K % 2 == 0) else out_b

    # -------------------- k == 0 : strip-local linear --------------------
    @pl.when(k == 0)
    def _():
        @pl.when(l == 0)
        def _():
            h = jnp.dot(x_ref[...], w1_ref[...],
                        preferred_element_type=jnp.float32) + b1_ref[...]
            out_a[rows, :] = h.astype(out_a.dtype)
            hres[rows, :] = coef_res * h

        @pl.when(l == 1)
        def _():
            h = jnp.dot(l1_final[rows, :], w2_ref[...],
                        preferred_element_type=jnp.float32) + b2_ref[...]
            out_a[rows, :] = h.astype(out_a.dtype)
            hres[rows, :] = coef_res * h

    # ------------- k >= 1 : one propagation step for this strip -------------
    # coef_prop is applied to the f32 accumulator AFTER the matmul, so the
    # adjacency is consumed straight from its bf16 input block (no scaled copy).
    def _prop(src, dst):
        acc = jnp.dot(adj_ref[...], src[...],
                      preferred_element_type=jnp.float32)
        dst[rows, :] = (coef_prop * acc + hres[rows, :]).astype(dst.dtype)

    @pl.when(jnp.logical_and(k > 0, k % 2 == 1))
    def _():
        _prop(out_a, out_b)

    @pl.when(jnp.logical_and(k > 0, k % 2 == 0))
    def _():
        _prop(out_b, out_a)

    # --------- last step of layer 2: row-wise log_softmax + store ---------
    @pl.when(jnp.logical_and(l == 1, k == K))
    def _():
        final = out_a if (K % 2 == 0) else out_b
        z = final[rows, :].astype(jnp.float32)
        col = jax.lax.broadcasted_iota(jnp.int32, z.shape, 1)
        valid = col < n_classes                   # mask out lane padding
        z = jnp.where(valid, z, jnp.float32(-1e30))
        m = jnp.max(z, axis=1, keepdims=True)
        s = z - m
        e = jnp.where(valid, jnp.exp(s), jnp.float32(0.0))
        lse = jnp.log(jnp.sum(e, axis=1, keepdims=True))
        o_ref[...] = (s - lse).astype(o_ref.dtype)


# ----------------------------------------------------------------------------
# Wrapper helpers
# ----------------------------------------------------------------------------
def _round_up(v, m):
    return ((v + m - 1) // m) * m


def _vmem_limit_bytes():
    # Generation-aware budget: ~3/4 of physical VMEM (v5e/v6e 128 MiB -> 96 MiB,
    # v7x 64 MiB -> 48 MiB).
    try:
        cap = int(pltpu.get_tpu_info().vmem_capacity_bytes)
    except Exception:  # pragma: no cover - conservative fallback
        cap = 128 * 1024 * 1024
    return max(32 * 1024 * 1024, (cap * 3) // 4)


def _pick_tm(n_p, cin_p, f_p, vmem_limit):
    """Largest row-strip height (multiple of 128 dividing n_p) fitting VMEM."""
    resident = (2 * n_p * f_p * 2          # out_a + out_b (bf16, scratch)
                + n_p * f_p * 4            # coef_res * h   (f32, scratch)
                + 2 * (cin_p * f_p + f_p * f_p) * 2)   # weights (dbl-buffered)
    for tm in (1024, 512, 256, 128):
        if n_p % tm:
            continue
        streamed = (2 * tm * n_p * 2       # adj strip double-buffer (bf16)
                    + 2 * tm * cin_p * 2   # x strip double-buffer (bf16)
                    + 2 * tm * f_p * 4)    # output strip double-buffer (f32)
        if resident + streamed <= int(vmem_limit * 0.8):
            return tm
    return 128


def prepare_adj(adj):
    """Pad (to a multiple of 128) + cast the normalized adjacency ONCE per
    graph; reuse the result across forward calls (hoisted off the hot path)."""
    n = adj.shape[0]
    n_p = _round_up(n, LANE)
    adj_bf16 = adj.astype(jnp.bfloat16)
    if n_p == n:
        return adj_bf16
    return jnp.zeros((n_p, n_p), jnp.bfloat16).at[:n, :n].set(adj_bf16)


@functools.partial(jax.jit, static_argnames=("alpha", "K"))
def net_forward(x, adj_p, params, *, alpha, K):
    """Net.forward in eval mode: dropout(id) -> conv1 -> dropout(id) -> conv2
    -> log_softmax.  `adj_p` is the padded bf16 adjacency from prepare_adj."""
    n, cin = x.shape
    n_p = adj_p.shape[0]
    hid = params["w1"].shape[1]
    cout = params["w2"].shape[1]

    cin_p = _round_up(cin, LANE)
    hid_p = _round_up(hid, LANE)
    cout_p = _round_up(cout, LANE)
    # v6e/v7x MXU tiles are 256 wide: if hidden exceeds one lane group, round
    # it up to a multiple of 256 so the propagation RHS fills the MXU.
    if hid_p > LANE:
        hid_p = _round_up(hid_p, 256)
    f_p = max(hid_p, cout_p)     # both layers share the same signal buffers

    vmem_limit = _vmem_limit_bytes()
    tm = _pick_tm(n_p, cin_p, f_p, vmem_limit)
    n_strips = n_p // tm
    K = int(K)

    # Small per-call pads (fuse under jit). Zero padding is exact: padded rows /
    # cols never leak into the valid region we slice out at the end.
    x_p = jnp.zeros((n_p, cin_p), jnp.bfloat16).at[:n, :cin].set(
        x.astype(jnp.bfloat16))
    w1_p = jnp.zeros((cin_p, f_p), jnp.bfloat16).at[:cin, :hid].set(
        params["w1"].astype(jnp.bfloat16))
    b1_p = jnp.zeros((1, f_p), jnp.float32).at[:, :hid].set(
        params["b1"].astype(jnp.float32))
    w2_p = jnp.zeros((f_p, f_p), jnp.bfloat16).at[:hid, :cout].set(
        params["w2"].astype(jnp.bfloat16))
    b2_p = jnp.zeros((1, f_p), jnp.float32).at[:, :cout].set(
        params["b2"].astype(jnp.float32))

    kernel = functools.partial(_net_kernel, alpha=float(alpha), K=K,
                               n_classes=int(cout), tm=tm)

    # Index maps: blocks are only cycled on the passes that actually use them
    # (x only at layer0/k0, adj only at k>0, output only on the final pass),
    # so no DMA or writeback is wasted on the other grid steps.
    def x_map(l, k, i):
        return (i * jnp.logical_and(l == 0, k == 0).astype(jnp.int32), 0)

    def adj_map(l, k, i):
        return (i * (k > 0).astype(jnp.int32), 0)

    def const_map(l, k, i):
        return (0, 0)

    def out_map(l, k, i):
        return (i * jnp.logical_and(l == 1, k == K).astype(jnp.int32), 0)

    flops = (2 * n_p * cin_p * f_p              # linear 1
             + 2 * n_p * f_p * f_p              # linear 2
             + 2 * 2 * K * n_p * n_p * f_p)     # 2 layers x K propagation steps
    transcendentals = n_p * f_p + n_p           # exp + log
    bytes_accessed = (x_p.size * 2 + 2 * K * n_p * n_p * 2
                      + (w1_p.size + w2_p.size) * 2
                      + (b1_p.size + b2_p.size) * 4 + n_p * f_p * 4)

    out_p = pl.pallas_call(
        kernel,
        out_shape=jax.ShapeDtypeStruct((n_p, f_p), jnp.float32),
        grid_spec=pltpu.PrefetchScalarGridSpec(
            num_scalar_prefetch=0,
            grid=(2, K + 1, n_strips),
            in_specs=[
                pl.BlockSpec((tm, cin_p), x_map),      # x strips
                pl.BlockSpec((tm, n_p), adj_map),      # adj row strips (streamed)
                pl.BlockSpec((cin_p, f_p), const_map),  # w1 (resident)
                pl.BlockSpec((1, f_p), const_map),      # b1
                pl.BlockSpec((f_p, f_p), const_map),    # w2
                pl.BlockSpec((1, f_p), const_map),      # b2
            ],
            out_specs=pl.BlockSpec((tm, f_p), out_map),
            scratch_shapes=[
                pltpu.VMEM((n_p, f_p), jnp.bfloat16),   # out_a (ping)
                pltpu.VMEM((n_p, f_p), jnp.bfloat16),   # out_b (pong)
                pltpu.VMEM((n_p, f_p), jnp.float32),    # coef_res * h
            ],
        ),
        compiler_params=pltpu.CompilerParams(
            dimension_semantics=("arbitrary", "arbitrary", "arbitrary"),
            vmem_limit_bytes=vmem_limit,
        ),
        cost_estimate=pl.CostEstimate(flops=flops,
                                      transcendentals=transcendentals,
                                      bytes_accessed=bytes_accessed),
    )(x_p, adj_p, w1_p, b1_p, w2_p, b2_p)

    return out_p[:n, :cout]


# ----------------------------------------------------------------------------
# Parameter / input construction (deterministic, in-script)
# ----------------------------------------------------------------------------
def init_params(key, in_channels, hidden_num, out_channels):
    k1, k2, k3, k4 = jax.random.split(key, 4)

    def glorot(k, fan_in, fan_out):
        limit = jnp.sqrt(6.0 / (fan_in + fan_out))
        return jax.random.uniform(k, (fan_in, fan_out), jnp.float32, -limit, limit)

    return {
        "w1": glorot(k1, in_channels, hidden_num),
        "b1": jax.random.normal(k2, (1, hidden_num), jnp.float32) * 0.01,
        "w2": glorot(k3, hidden_num, out_channels),
        "b2": jax.random.normal(k4, (1, out_channels), jnp.float32) * 0.01,
    }


def make_normalized_adj(key, n):
    # random symmetric binary adjacency + self loops, then D^-1/2 (A+I) D^-1/2
    a = (jax.random.uniform(key, (n, n)) < 0.3).astype(jnp.float32)
    a = jnp.maximum(a, a.T)
    a = a * (1.0 - jnp.eye(n)) + jnp.eye(n)
    deg = jnp.sum(a, axis=1)
    d_inv_sqrt = 1.0 / jnp.sqrt(deg)
    return a * d_inv_sqrt[:, None] * d_inv_sqrt[None, :]


if __name__ == "__main__":
    # small, forward-consistent shapes
    N = 16            # number of nodes
    IN_CHANNELS = 8
    HIDDEN = 32
    OUT_CHANNELS = 4
    ALPHA = 0.5
    K = 4

    key = jax.random.PRNGKey(0)
    kx, kadj, kp = jax.random.split(key, 3)

    x = jax.random.normal(kx, (N, IN_CHANNELS), jnp.float32)
    adj = make_normalized_adj(kadj, N)
    params = init_params(kp, IN_CHANNELS, HIDDEN, OUT_CHANNELS)

    adj_p = prepare_adj(adj)               # once per graph (hoisted pad+cast)
    out = net_forward(x, adj_p, params, alpha=ALPHA, K=K)
    out = jax.block_until_ready(out)

    assert out.shape == (N, OUT_CHANNELS)
    # rows of log_softmax must exp-sum to 1
    row_sums = jnp.sum(jnp.exp(out), axis=1)
    assert jnp.allclose(row_sums, jnp.ones_like(row_sums), atol=1e-3)

    print("KERNEL_OK")
</pallas_src>

<mosaic_0001>
module attributes {stable_mosaic.version = 11 : i64} {
  func.func @_net_kernel(%arg0: i32, %arg1: i32, %arg2: i32, %arg3: memref<128x128xbf16, #tpu.memory_space<vmem>>, %arg4: memref<128x128xbf16, #tpu.memory_space<vmem>>, %arg5: memref<128x128xbf16, #tpu.memory_space<vmem>>, %arg6: memref<1x128xf32, #tpu.memory_space<vmem>>, %arg7: memref<128x128xbf16, #tpu.memory_space<vmem>>, %arg8: memref<1x128xf32, #tpu.memory_space<vmem>>, %arg9: memref<128x128xf32, #tpu.memory_space<vmem>>, %arg10: memref<128x128xbf16, #tpu.memory_space<vmem>>, %arg11: memref<128x128xbf16, #tpu.memory_space<vmem>>, %arg12: memref<128x128xf32, #tpu.memory_space<vmem>>) attributes {dimension_semantics = [#tpu.dimension_semantics<arbitrary>, #tpu.dimension_semantics<arbitrary>, #tpu.dimension_semantics<arbitrary>], iteration_bounds = array<i64: 2, 5, 1>, scalar_prefetch = 0 : i64, scratch_operands = 3 : i64, tpu.core_type = #tpu.core_type<tc>, window_params = [{transform_indices = @transform_0, window_bounds = array<i64: 128, 128>}, {transform_indices = @transform_1, window_bounds = array<i64: 128, 128>}, {pipeline_mode = #tpu.pipeline_mode<synchronous>, transform_indices = @transform_2, window_bounds = array<i64: 128, 128>}, {pipeline_mode = #tpu.pipeline_mode<synchronous>, transform_indices = @transform_3, window_bounds = array<i64: 1, 128>}, {pipeline_mode = #tpu.pipeline_mode<synchronous>, transform_indices = @transform_4, window_bounds = array<i64: 128, 128>}, {pipeline_mode = #tpu.pipeline_mode<synchronous>, transform_indices = @transform_5, window_bounds = array<i64: 1, 128>}, {transform_indices = @transform_6, window_bounds = array<i64: 128, 128>}]} {
    %c128_i32 = arith.constant 128 : i32
    %0 = arith.muli %arg2, %c128_i32 : i32
    %1 = tpu.assume_multiple %0, 128 : i32
    %c0_i32 = arith.constant 0 : i32
    %2 = arith.cmpi eq, %arg1, %c0_i32 : i32
    %3 = arith.extui %2 : i1 to i32
    %cst = arith.constant 0.666666686 : f32
    %c0_i32_0 = arith.constant 0 : i32
    %4 = arith.cmpi ne, %3, %c0_i32_0 : i32
    scf.if %4 {
      %c0_i32_21 = arith.constant 0 : i32
      %40 = arith.cmpi eq, %arg0, %c0_i32_21 : i32
      %41 = arith.extui %40 : i1 to i32
      %c0_i32_22 = arith.constant 0 : i32
      %42 = arith.cmpi ne, %41, %c0_i32_22 : i32
      scf.if %42 {
        %c0 = arith.constant 0 : index
        %c0_25 = arith.constant 0 : index
        %46 = vector.load %arg3[%c0, %c0_25] : memref<128x128xbf16, #tpu.memory_space<vmem>>, vector<128x128xbf16>
        %c0_26 = arith.constant 0 : index
        %c0_27 = arith.constant 0 : index
        %47 = vector.load %arg5[%c0_26, %c0_27] : memref<128x128xbf16, #tpu.memory_space<vmem>>, vector<128x128xbf16>
        %cst_28 = arith.constant dense<0.000000e+00> : vector<128x128xf32>
        %48 = tpu.matmul %46, %47, %cst_28 {dimension_numbers = #tpu.dot_dimension_numbers<[1], [0], [0], [1], [0, 0, 1, 1], [], []>} : vector<128x128xbf16>, vector<128x128xbf16>, vector<128x128xf32> -> vector<128x128xf32>
        %c0_29 = arith.constant 0 : index
        %c0_30 = arith.constant 0 : index
        %49 = vector.load %arg6[%c0_29, %c0_30] : memref<1x128xf32, #tpu.memory_space<vmem>>, vector<1x128xf32>
        %50 = vector.broadcast %49 : vector<1x128xf32> to vector<128x128xf32>
        %51 = arith.addf %48, %50 : vector<128x128xf32>
        %52 = arith.truncf %51 : vector<128x128xf32> to vector<128x128xbf16>
        %53 = arith.index_cast %1 : i32 to index
        %c0_31 = arith.constant 0 : index
        %54 = vector.load %arg10[%53, %c0_31] : memref<128x128xbf16, #tpu.memory_space<vmem>>, vector<128x128xbf16>
        tpu.vector_store %arg10[%53, %c0_31], %52 {strides = array<i32>} : memref<128x128xbf16, #tpu.memory_space<vmem>>, vector<128x128xbf16>,
        %55 = vector.broadcast %cst : f32 to vector<128x128xf32>
        %56 = arith.mulf %55, %51 : vector<128x128xf32>
        %57 = arith.index_cast %1 : i32 to index
        %c0_32 = arith.constant 0 : index
        %58 = vector.load %arg12[%57, %c0_32] : memref<128x128xf32, #tpu.memory_space<vmem>>, vector<128x128xf32>
        tpu.vector_store %arg12[%57, %c0_32], %56 {strides = array<i32>} : memref<128x128xf32, #tpu.memory_space<vmem>>, vector<128x128xf32>,
      } else {
      }
      %c1_i32_23 = arith.constant 1 : i32
      %43 = arith.cmpi eq, %arg0, %c1_i32_23 : i32
      %44 = arith.extui %43 : i1 to i32
      %c0_i32_24 = arith.constant 0 : i32
      %45 = arith.cmpi ne, %44, %c0_i32_24 : i32
      scf.if %45 {
        %46 = arith.index_cast %1 : i32 to index
        %c0 = arith.constant 0 : index
        %47 = vector.load %arg10[%46, %c0] : memref<128x128xbf16, #tpu.memory_space<vmem>>, vector<128x128xbf16>
        %c0_25 = arith.constant 0 : index
        %c0_26 = arith.constant 0 : index
        %48 = vector.load %arg7[%c0_25, %c0_26] : memref<128x128xbf16, #tpu.memory_space<vmem>>, vector<128x128xbf16>
        %cst_27 = arith.constant dense<0.000000e+00> : vector<128x128xf32>
        %49 = tpu.matmul %47, %48, %cst_27 {dimension_numbers = #tpu.dot_dimension_numbers<[1], [0], [0], [1], [0, 0, 1, 1], [], []>} : vector<128x128xbf16>, vector<128x128xbf16>, vector<128x128xf32> -> vector<128x128xf32>
        %c0_28 = arith.constant 0 : index
        %c0_29 = arith.constant 0 : index
        %50 = vector.load %arg8[%c0_28, %c0_29] : memref<1x128xf32, #tpu.memory_space<vmem>>, vector<1x128xf32>
        %51 = vector.broadcast %50 : vector<1x128xf32> to vector<128x128xf32>
        %52 = arith.addf %49, %51 : vector<128x128xf32>
        %53 = arith.truncf %52 : vector<128x128xf32> to vector<128x128xbf16>
        %54 = arith.index_cast %1 : i32 to index
        %c0_30 = arith.constant 0 : index
        %55 = vector.load %arg10[%54, %c0_30] : memref<128x128xbf16, #tpu.memory_space<vmem>>, vector<128x128xbf16>
        tpu.vector_store %arg10[%54, %c0_30], %53 {strides = array<i32>} : memref<128x128xbf16, #tpu.memory_space<vmem>>, vector<128x128xbf16>,
        %56 = vector.broadcast %cst : f32 to vector<128x128xf32>
        %57 = arith.mulf %56, %52 : vector<128x128xf32>
        %58 = arith.index_cast %1 : i32 to index
        %c0_31 = arith.constant 0 : index
        %59 = vector.load %arg12[%58, %c0_31] : memref<128x128xf32, #tpu.memory_space<vmem>>, vector<128x128xf32>
        tpu.vector_store %arg12[%58, %c0_31], %57 {strides = array<i32>} : memref<128x128xf32, #tpu.memory_space<vmem>>, vector<128x128xf32>,
      } else {
      }
    } else {
    }
    %c0_i32_1 = arith.constant 0 : i32
    %5 = arith.cmpi sgt, %arg1, %c0_i32_1 : i32
    %c2_i32 = arith.constant 2 : i32
    %c0_i32_2 = arith.constant 0 : i32
    %6 = arith.cmpi eq, %c2_i32, %c0_i32_2 : i32
    %c1_i32 = arith.constant 1 : i32
    %7 = arith.select %6, %c1_i32, %c2_i32 : i32
    %8 = arith.remsi %arg1, %7 : i32
    %c0_i32_3 = arith.constant 0 : i32
    %9 = arith.cmpi ne, %8, %c0_i32_3 : i32
    %c0_i32_4 = arith.constant 0 : i32
    %10 = arith.cmpi slt, %8, %c0_i32_4 : i32
    %c0_i32_5 = arith.constant 0 : i32
    %11 = arith.cmpi slt, %7, %c0_i32_5 : i32
    %12 = arith.xori %10, %11 : i1
    %13 = arith.andi %12, %9 : i1
    %14 = arith.addi %8, %7 : i32
    %15 = arith.select %13, %14, %8 : i32
    %c1_i32_6 = arith.constant 1 : i32
    %16 = arith.cmpi eq, %15, %c1_i32_6 : i32
    %17 = arith.andi %5, %16 : i1
    %18 = arith.extui %17 : i1 to i32
    %cst_7 = arith.constant 0.333333343 : f32
    %c0_i32_8 = arith.constant 0 : i32
    %19 = arith.cmpi ne, %18, %c0_i32_8 : i32
    scf.if %19 {
      %c0 = arith.constant 0 : index
      %c0_21 = arith.constant 0 : index
      %40 = vector.load %arg4[%c0, %c0_21] : memref<128x128xbf16, #tpu.memory_space<vmem>>, vector<128x128xbf16>
      %c0_22 = arith.constant 0 : index
      %c0_23 = arith.constant 0 : index
      %41 = vector.load %arg10[%c0_22, %c0_23] : memref<128x128xbf16, #tpu.memory_space<vmem>>, vector<128x128xbf16>
      %cst_24 = arith.constant dense<0.000000e+00> : vector<128x128xf32>
      %42 = tpu.matmul %40, %41, %cst_24 {dimension_numbers = #tpu.dot_dimension_numbers<[1], [0], [0], [1], [0, 0, 1, 1], [], []>} : vector<128x128xbf16>, vector<128x128xbf16>, vector<128x128xf32> -> vector<128x128xf32>
      %43 = vector.broadcast %cst_7 : f32 to vector<128x128xf32>
      %44 = arith.mulf %43, %42 : vector<128x128xf32>
      %45 = arith.index_cast %1 : i32 to index
      %c0_25 = arith.constant 0 : index
      %46 = vector.load %arg12[%45, %c0_25] : memref<128x128xf32, #tpu.memory_space<vmem>>, vector<128x128xf32>
      %47 = arith.addf %44, %46 : vector<128x128xf32>
      %48 = arith.truncf %47 : vector<128x128xf32> to vector<128x128xbf16>
      %49 = arith.index_cast %1 : i32 to index
      %c0_26 = arith.constant 0 : index
      %50 = vector.load %arg11[%49, %c0_26] : memref<128x128xbf16, #tpu.memory_space<vmem>>, vector<128x128xbf16>
      tpu.vector_store %arg11[%49, %c0_26], %48 {strides = array<i32>} : memref<128x128xbf16, #tpu.memory_space<vmem>>, vector<128x128xbf16>,
    } else {
    }
    %c0_i32_9 = arith.constant 0 : i32
    %20 = arith.cmpi sgt, %arg1, %c0_i32_9 : i32
    %c2_i32_10 = arith.constant 2 : i32
    %c0_i32_11 = arith.constant 0 : i32
    %21 = arith.cmpi eq, %c2_i32_10, %c0_i32_11 : i32
    %c1_i32_12 = arith.constant 1 : i32
    %22 = arith.select %21, %c1_i32_12, %c2_i32_10 : i32
    %23 = arith.remsi %arg1, %22 : i32
    %c0_i32_13 = arith.constant 0 : i32
    %24 = arith.cmpi ne, %23, %c0_i32_13 : i32
    %c0_i32_14 = arith.constant 0 : i32
    %25 = arith.cmpi slt, %23, %c0_i32_14 : i32
    %c0_i32_15 = arith.constant 0 : i32
    %26 = arith.cmpi slt, %22, %c0_i32_15 : i32
    %27 = arith.xori %25, %26 : i1
    %28 = arith.andi %27, %24 : i1
    %29 = arith.addi %23, %22 : i32
    %30 = arith.select %28, %29, %23 : i32
    %c0_i32_16 = arith.constant 0 : i32
    %31 = arith.cmpi eq, %30, %c0_i32_16 : i32
    %32 = arith.andi %20, %31 : i1
    %33 = arith.extui %32 : i1 to i32
    %cst_17 = arith.constant 0.333333343 : f32
    %c0_i32_18 = arith.constant 0 : i32
    %34 = arith.cmpi ne, %33, %c0_i32_18 : i32
    scf.if %34 {
      %c0 = arith.constant 0 : index
      %c0_21 = arith.constant 0 : index
      %40 = vector.load %arg4[%c0, %c0_21] : memref<128x128xbf16, #tpu.memory_space<vmem>>, vector<128x128xbf16>
      %c0_22 = arith.constant 0 : index
      %c0_23 = arith.constant 0 : index
      %41 = vector.load %arg11[%c0_22, %c0_23] : memref<128x128xbf16, #tpu.memory_space<vmem>>, vector<128x128xbf16>
      %cst_24 = arith.constant dense<0.000000e+00> : vector<128x128xf32>
      %42 = tpu.matmul %40, %41, %cst_24 {dimension_numbers = #tpu.dot_dimension_numbers<[1], [0], [0], [1], [0, 0, 1, 1], [], []>} : vector<128x128xbf16>, vector<128x128xbf16>, vector<128x128xf32> -> vector<128x128xf32>
      %43 = vector.broadcast %cst_17 : f32 to vector<128x128xf32>
      %44 = arith.mulf %43, %42 : vector<128x128xf32>
      %45 = arith.index_cast %1 : i32 to index
      %c0_25 = arith.constant 0 : index
      %46 = vector.load %arg12[%45, %c0_25] : memref<128x128xf32, #tpu.memory_space<vmem>>, vector<128x128xf32>
      %47 = arith.addf %44, %46 : vector<128x128xf32>
      %48 = arith.truncf %47 : vector<128x128xf32> to vector<128x128xbf16>
      %49 = arith.index_cast %1 : i32 to index
      %c0_26 = arith.constant 0 : index
      %50 = vector.load %arg10[%49, %c0_26] : memref<128x128xbf16, #tpu.memory_space<vmem>>, vector<128x128xbf16>
      tpu.vector_store %arg10[%49, %c0_26], %48 {strides = array<i32>} : memref<128x128xbf16, #tpu.memory_space<vmem>>, vector<128x128xbf16>,
    } else {
    }
    %c1_i32_19 = arith.constant 1 : i32
    %35 = arith.cmpi eq, %arg0, %c1_i32_19 : i32
    %c4_i32 = arith.constant 4 : i32
    %36 = arith.cmpi eq, %arg1, %c4_i32 : i32
    %37 = arith.andi %35, %36 : i1
    %38 = arith.extui %37 : i1 to i32
    %c0_i32_20 = arith.constant 0 : i32
    %39 = arith.cmpi ne, %38, %c0_i32_20 : i32
    scf.if %39 {
      %40 = arith.index_cast %1 : i32 to index
      %c0 = arith.constant 0 : index
      %41 = vector.load %arg10[%40, %c0] : memref<128x128xbf16, #tpu.memory_space<vmem>>, vector<128x128xbf16>
      %42 = arith.extf %41 : vector<128x128xbf16> to vector<128x128xf32>
      %43 = tpu.iota {dimensions = array<i32: 1>} : vector<128x128xi32>
      %c4_i32_21 = arith.constant 4 : i32
      %44 = vector.broadcast %c4_i32_21 : i32 to vector<128x128xi32>
      %45 = arith.cmpi slt, %43, %44 : vector<128x128xi32>
      %cst_22 = arith.constant -1.000000e+30 : f32
      %46 = vector.broadcast %cst_22 : f32 to vector<128x128xf32>
      %47 = arith.select %45, %42, %46 : vector<128x128xi1>, vector<128x128xf32>
      %cst_23 = arith.constant dense<0xFF800000> : vector<128xf32>
      %48 = vector.multi_reduction <maximumf>, %47, %cst_23 [1] : vector<128x128xf32> to vector<128xf32>
      %49 = vector.shape_cast %48 : vector<128xf32> to vector<128x1xf32>
      %50 = vector.broadcast %49 : vector<128x1xf32> to vector<128x128xf32>
      %51 = arith.subf %47, %50 : vector<128x128xf32>
      %52 = math.exp %51 : vector<128x128xf32>
      %cst_24 = arith.constant 0.000000e+00 : f32
      %53 = vector.broadcast %cst_24 : f32 to vector<128x128xf32>
      %54 = arith.select %45, %52, %53 : vector<128x128xi1>, vector<128x128xf32>
      %cst_25 = arith.constant dense<0.000000e+00> : vector<128xf32>
      %55 = vector.multi_reduction <add>, %54, %cst_25 [1] : vector<128x128xf32> to vector<128xf32>
      %56 = vector.shape_cast %55 : vector<128xf32> to vector<128x1xf32>
      %57 = math.log %56 : vector<128x1xf32>
      %58 = vector.broadcast %57 : vector<128x1xf32> to vector<128x128xf32>
      %59 = arith.subf %51, %58 : vector<128x128xf32>
      %c0_26 = arith.constant 0 : index
      %c0_27 = arith.constant 0 : index
      %60 = vector.load %arg9[%c0_26, %c0_27] : memref<128x128xf32, #tpu.memory_space<vmem>>, vector<128x128xf32>
      tpu.vector_store %arg9[%c0_26, %c0_27], %59 {strides = array<i32>} : memref<128x128xf32, #tpu.memory_space<vmem>>, vector<128x128xf32>,
    } else {
    }
    return
  }
  func.func @transform_0(%arg0: i32, %arg1: i32, %arg2: i32) -> (i32, i32) {
    %c0_i32 = arith.constant 0 : i32
    %0 = arith.cmpi eq, %arg0, %c0_i32 : i32
    %c0_i32_0 = arith.constant 0 : i32
    %1 = arith.cmpi eq, %arg1, %c0_i32_0 : i32
    %2 = arith.andi %0, %1 : i1
    %3 = arith.extui %2 : i1 to i32
    %4 = arith.muli %arg2, %3 : i32
    %c0_i32_1 = arith.constant 0 : i32
    %c0_i32_2 = arith.constant 0 : i32
    return %4, %c0_i32_1 : i32, i32
  }
  func.func @transform_1(%arg0: i32, %arg1: i32, %arg2: i32) -> (i32, i32) {
    %c0_i32 = arith.constant 0 : i32
    %0 = arith.cmpi sgt, %arg1, %c0_i32 : i32
    %1 = arith.extui %0 : i1 to i32
    %2 = arith.muli %arg2, %1 : i32
    %c0_i32_0 = arith.constant 0 : i32
    %c0_i32_1 = arith.constant 0 : i32
    return %2, %c0_i32_0 : i32, i32
  }
  func.func @transform_2(%arg0: i32, %arg1: i32, %arg2: i32) -> (i32, i32) {
    %c0_i32 = arith.constant 0 : i32
    %c0_i32_0 = arith.constant 0 : i32
    %c0_i32_1 = arith.constant 0 : i32
    return %c0_i32, %c0_i32_0 : i32, i32
  }
  func.func @transform_3(%arg0: i32, %arg1: i32, %arg2: i32) -> (i32, i32) {
    %c0_i32 = arith.constant 0 : i32
    %c0_i32_0 = arith.constant 0 : i32
    %c0_i32_1 = arith.constant 0 : i32
    return %c0_i32, %c0_i32_0 : i32, i32
  }
  func.func @transform_4(%arg0: i32, %arg1: i32, %arg2: i32) -> (i32, i32) {
    %c0_i32 = arith.constant 0 : i32
    %c0_i32_0 = arith.constant 0 : i32
    %c0_i32_1 = arith.constant 0 : i32
    return %c0_i32, %c0_i32_0 : i32, i32
  }
  func.func @transform_5(%arg0: i32, %arg1: i32, %arg2: i32) -> (i32, i32) {
    %c0_i32 = arith.constant 0 : i32
    %c0_i32_0 = arith.constant 0 : i32
    %c0_i32_1 = arith.constant 0 : i32
    return %c0_i32, %c0_i32_0 : i32, i32
  }
  func.func @transform_6(%arg0: i32, %arg1: i32, %arg2: i32) -> (i32, i32) {
    %c1_i32 = arith.constant 1 : i32
    %0 = arith.cmpi eq, %arg0, %c1_i32 : i32
    %c4_i32 = arith.constant 4 : i32
    %1 = arith.cmpi eq, %arg1, %c4_i32 : i32
    %2 = arith.andi %0, %1 : i1
    %3 = arith.extui %2 : i1 to i32
    %4 = arith.muli %arg2, %3 : i32
    %c0_i32 = arith.constant 0 : i32
    %c0_i32_0 = arith.constant 0 : i32
    return %4, %c0_i32 : i32, i32
  }
}

</mosaic_0001>

<llo_original>
// kernel: net_forward.1
$region0: #{net_forward.1}
  #allocation0 [shape = 'u32[]', space=smem, size = 0x4, offset = 0x4, fixed_abs, tag = 'smem constant byte address 0x4 - core index']
  #allocation1 [shape = 'u32[144,128]{1,0:T(1,128)}', space=vmem, size = 0x12000, scoped, tag = 'internal scratch']
  #allocation2 [shape = 'bf16[128,128]{1,0:T(16,128)(2,1)}', space=vmem, size = 0x8000, scoped, tag = 'scratch operand']
  #allocation3 [shape = 'bf16[128,128]{1,0:T(16,128)(2,1)}', space=vmem, size = 0x8000, scoped, tag = 'scratch operand']
  #allocation4 [shape = 'f32[128,128]{1,0:T(8,128)}', space=vmem, size = 0x10000, scoped, tag = 'scratch operand']
  %s0 = inlined_call_operand.hbm [shape: bf16[128,128], index: 0, kind: input, shape index: {}]
  %s1 = inlined_call_operand.hbm [shape: bf16[128,128], index: 1, kind: input, shape index: {}]
  %s2 = inlined_call_operand.hbm [shape: bf16[128,128], index: 2, kind: input, shape index: {}]
  %s3 = inlined_call_operand.hbm [shape: f32[1,128], index: 3, kind: input, shape index: {}]
  %s4 = inlined_call_operand.hbm [shape: bf16[128,128], index: 4, kind: input, shape index: {}]
  %s5 = inlined_call_operand.hbm [shape: f32[1,128], index: 5, kind: input, shape index: {}]
  %s6 = inlined_call_operand.hbm [shape: f32[128,128], index: 6, kind: output, shape index: {}]
  %s7 = sld [smem:[#allocation0]]
  $region105: #{net_forward.1} parent=0
    _
  %s9 = ssub.s32 1, %s7
  %s10 = scalar_select 0, %s9, %s7
  $region1: #{net_forward.1} parent=0
    #allocation5 [shape = 'u8[65536]{0}', space=vmem, size = 0x10000, scoped, tag = 'input window, operand 0']
    #allocation6 [shape = 's32[2]{0}', space=sflag, size = 0x8, scoped, tag = 'scoped memory for net_forward.1']
    #allocation7 [shape = 's32[2]{0}', space=sflag, size = 0x8, scoped, tag = 'scoped memory for net_forward.1']
    #allocation8 [shape = 'u8[65536]{0}', space=vmem, size = 0x10000, scoped, tag = 'input window, operand 1']
    #allocation9 [shape = 's32[2]{0}', space=sflag, size = 0x8, scoped, tag = 'scoped memory for net_forward.1']
    #allocation10 [shape = 'u8[32768]{0}', space=vmem, size = 0x8000, scoped, tag = 'input window, operand 2, single buffered']
    #allocation11 [shape = 'u8[512]{0}', space=vmem, size = 0x400, scoped, tag = 'input window, operand 3, single buffered']
    #allocation12 [shape = 's32[1]{0}', space=sflag, size = 0x4, scoped, tag = 'scoped memory for net_forward.1']
    #allocation13 [shape = 'u8[32768]{0}', space=vmem, size = 0x8000, scoped, tag = 'input window, operand 4, single buffered']
    #allocation14 [shape = 'u8[512]{0}', space=vmem, size = 0x400, scoped, tag = 'input window, operand 5, single buffered']
    #allocation15 [shape = 's32[1]{0}', space=sflag, size = 0x4, scoped, tag = 'scoped memory for net_forward.1']
    #allocation16 [shape = 'u8[131072]{0}', space=vmem, size = 0x20000, scoped, tag = 'output window, operand 0']
    %11 = vsyncpa [#allocation6], 0
    %s12 = scalar_lea.sflag [#allocation6], 1
    %13 = vsyncpa %s12, 0
    %14 = vsyncpa [#allocation9], 0
    %s15 = scalar_lea.sflag [#allocation9], 1
    %16 = vsyncpa %s15, 0
    %17 = vsyncpa [#allocation12], 0
    %18 = vsyncpa [#allocation15], 0
    %19 = vsyncpa [#allocation7], 0
    %s20 = scalar_lea.sflag [#allocation7], 1
    %21 = vsyncpa %s20, 0
    loop: start=0, step=1, limit=12
    $region2: #{net_forward.1} parent=1 // loop_pre_header
      _
    $region3: #{net_forward.1} parent=1 // loop_header
      %s23 = sphi 0, %s27
      %p24 = scmp.ge.s32.totalorder %s23, 12
      %s30 = sphi 0, %s49
      %s31 = sphi 0, %s45
      %s32 = sphi 0, %s41
      %s33 = sphi 0, %s30
      %s34 = sphi 0, %s31
      %s35 = sphi 0, %s32
      %s36 = sphi 0, %s33
      %s37 = sphi 0, %s34
      %s38 = sphi 0, %s35
      %s64 = sphi 0, %s66
      %s67 = sphi 0, %s64
      %s68 = sphi 0, %s67
      %s84 = sphi 0, %s68
      %s96 = sphi 0, %s98
      %s99 = sphi 0, %s96
      %s100 = sphi 0, %s99
      %s116 = sphi 0, %s100
      %s120 = sphi 0, %s120
      %s122 = sphi 0, %s120
      %s123 = sphi 0, %s122
      %s137 = sphi 0, %s123
      %s141 = sphi 0, %s141
      %s143 = sphi 0, %s141
      %s144 = sphi 0, %s143
      %s158 = sphi 0, %s144
      %s162 = sphi 0, %s162
      %s164 = sphi 0, %s162
      %s165 = sphi 0, %s164
      %s179 = sphi 0, %s165
      %s183 = sphi 0, %s183
      %s185 = sphi 0, %s183
      %s186 = sphi 0, %s185
      %s200 = sphi 0, %s186
      %s218 = sphi 0, %s220
      %s221 = sphi 0, %s218
      %s222 = sphi 0, %s221
      %s238 = sphi 0, %s222
    $region4: #{net_forward.1} parent=1 // loop_header_branch
      %26 = sbr.rel (%p24) target = $region8
    $region5: #{net_forward.1} parent=1 // loop_body
      %s28 = ssub.s32 %s23, 1
      %s29 = ssub.s32 %s23, 2
      %s39 = sadd.s32 1, %s32
      %p40 = scmp.ge.s32.totalorder %s39, 1
      %s41 = scalar_select %p40, 0, %s39
      %s42 = sadd.s32 1, %s31
      %s43 = scalar_select %p40, %s42, %s31
      %p44 = scmp.ge.s32.totalorder %s43, 5
      %s45 = scalar_select %p44, 0, %s43
      %s46 = sadd.s32 1, %s30
      %s47 = scalar_select %p44, %s46, %s30
      %p48 = scmp.ge.s32.totalorder %s47, 2
      %s49 = scalar_select %p48, 0, %s47
      %p50 = scmp.eq.s32.totalorder %s30, 0
      %p51 = scmp.eq.s32.totalorder %s31, 0
      %p52 = pnand %p50, %p51
      %p53 = pneg %p52
      %s54 = scalar_select %p53, 1, 0
      %s55 = smul.u32 %s32, %s54
      %p56 = scmp.eq.s32.totalorder %s49, 0
      %p57 = scmp.eq.s32.totalorder %s45, 0
      %p58 = pnand %p56, %p57
      %p59 = pneg %p58
      %s60 = scalar_select %p59, 1, 0
      %s61 = smul.u32 %s41, %s60
      %s62 = ssub.s32 %s55, %s61
      %p63 = scmp.eq.s32.totalorder %s62, 0
      %s65 = sadd.s32 %s64, 1
      %s66 = scalar_select %p63, %s64, %s65
      %p69 = pneg %p63
      %p70 = scmp.eq.s32.totalorder %s23, 9
      %p71 = por %p69, %p70
      %p72 = scmp.ne.s32.totalorder %s64, %s67
      %p73 = scmp.eq.s32.totalorder %s23, 0
      %p74 = por %p72, %p73
      %p75 = scmp.ne.s32.totalorder %s64, %s67
      %p76 = scmp.eq.s32.totalorder %s28, 9
      %p77 = por %p75, %p76
      %p78 = scmp.ne.s32.totalorder %s67, %s68
      %p79 = scmp.eq.s32.totalorder %s28, 0
      %p80 = por %p78, %p79
      %p81 = scmp.ne.s32.totalorder %s67, %s68
      %p82 = scmp.eq.s32.totalorder %s29, 9
      %p83 = por %p81, %p82
      %p85 = scmp.ne.s32.totalorder %s68, %s84
      %p86 = scmp.eq.s32.totalorder %s29, 0
      %p87 = por %p85, %p86
      %p88 = scmp.gt.s32.totalorder %s31, 0
      %s89 = scalar_select %p88, 1, 0
      %s90 = smul.u32 %s32, %s89
      %p91 = scmp.gt.s32.totalorder %s45, 0
      %s92 = scalar_select %p91, 1, 0
      %s93 = smul.u32 %s41, %s92
      %s94 = ssub.s32 %s90, %s93
      %p95 = scmp.eq.s32.totalorder %s94, 0
      %s97 = sadd.s32 %s96, 1
      %s98 = scalar_select %p95, %s96, %s97
      %p101 = pneg %p95
      %p102 = scmp.eq.s32.totalorder %s23, 9
      %p103 = por %p101, %p102
      %p104 = scmp.ne.s32.totalorder %s96, %s99
      %p105 = scmp.eq.s32.totalorder %s23, 0
      %p106 = por %p104, %p105
      %p107 = scmp.ne.s32.totalorder %s96, %s99
      %p108 = scmp.eq.s32.totalorder %s28, 9
      %p109 = por %p107, %p108
      %p110 = scmp.ne.s32.totalorder %s99, %s100
      %p111 = scmp.eq.s32.totalorder %s28, 0
      %p112 = por %p110, %p111
      %p113 = scmp.ne.s32.totalorder %s99, %s100
      %p114 = scmp.eq.s32.totalorder %s29, 9
      %p115 = por %p113, %p114
      %p117 = scmp.ne.s32.totalorder %s100, %s116
      %p118 = scmp.eq.s32.totalorder %s29, 0
      %p119 = por %p117, %p118
      %s121 = sadd.s32 %s120, 1
      %p124 = scmp.eq.s32.totalorder %s23, 9
      %p125 = scmp.ne.s32.totalorder %s120, %s122
      %p126 = scmp.eq.s32.totalorder %s23, 0
      %p127 = por %p125, %p126
      %p128 = scmp.ne.s32.totalorder %s120, %s122
      %p129 = scmp.eq.s32.totalorder %s28, 9
      %p130 = por %p128, %p129
      %p131 = scmp.ne.s32.totalorder %s122, %s123
      %p132 = scmp.eq.s32.totalorder %s28, 0
      %p133 = por %p131, %p132
      %p134 = scmp.ne.s32.totalorder %s122, %s123
      %p135 = scmp.eq.s32.totalorder %s29, 9
      %p136 = por %p134, %p135
      %p138 = scmp.ne.s32.totalorder %s123, %s137
      %p139 = scmp.eq.s32.totalorder %s29, 0
      %p140 = por %p138, %p139
      %s142 = sadd.s32 %s141, 1
      %p145 = scmp.eq.s32.totalorder %s23, 9
      %p146 = scmp.ne.s32.totalorder %s141, %s143
      %p147 = scmp.eq.s32.totalorder %s23, 0
      %p148 = por %p146, %p147
      %p149 = scmp.ne.s32.totalorder %s141, %s143
      %p150 = scmp.eq.s32.totalorder %s28, 9
      %p151 = por %p149, %p150
      %p152 = scmp.ne.s32.totalorder %s143, %s144
      %p153 = scmp.eq.s32.totalorder %s28, 0
      %p154 = por %p152, %p153
      %p155 = scmp.ne.s32.totalorder %s143, %s144
      %p156 = scmp.eq.s32.totalorder %s29, 9
      %p157 = por %p155, %p156
      %p159 = scmp.ne.s32.totalorder %s144, %s158
      %p160 = scmp.eq.s32.totalorder %s29, 0
      %p161 = por %p159, %p160
      %s163 = sadd.s32 %s162, 1
      %p166 = scmp.eq.s32.totalorder %s23, 9
      %p167 = scmp.ne.s32.totalorder %s162, %s164
      %p168 = scmp.eq.s32.totalorder %s23, 0
      %p169 = por %p167, %p168
      %p170 = scmp.ne.s32.totalorder %s162, %s164
      %p171 = scmp.eq.s32.totalorder %s28, 9
      %p172 = por %p170, %p171
      %p173 = scmp.ne.s32.totalorder %s164, %s165
      %p174 = scmp.eq.s32.totalorder %s28, 0
      %p175 = por %p173, %p174
      %p176 = scmp.ne.s32.totalorder %s164, %s165
      %p177 = scmp.eq.s32.totalorder %s29, 9
      %p178 = por %p176, %p177
      %p180 = scmp.ne.s32.totalorder %s165, %s179
      %p181 = scmp.eq.s32.totalorder %s29, 0
      %p182 = por %p180, %p181
      %s184 = sadd.s32 %s183, 1
      %p187 = scmp.eq.s32.totalorder %s23, 9
      %p188 = scmp.ne.s32.totalorder %s183, %s185
      %p189 = scmp.eq.s32.totalorder %s23, 0
      %p190 = por %p188, %p189
      %p191 = scmp.ne.s32.totalorder %s183, %s185
      %p192 = scmp.eq.s32.totalorder %s28, 9
      %p193 = por %p191, %p192
      %p194 = scmp.ne.s32.totalorder %s185, %s186
      %p195 = scmp.eq.s32.totalorder %s28, 0
      %p196 = por %p194, %p195
      %p197 = scmp.ne.s32.totalorder %s185, %s186
      %p198 = scmp.eq.s32.totalorder %s29, 9
      %p199 = por %p197, %p198
      %p201 = scmp.ne.s32.totalorder %s186, %s200
      %p202 = scmp.eq.s32.totalorder %s29, 0
      %p203 = por %p201, %p202
      %p204 = scmp.eq.s32.totalorder %s30, 1
      %p205 = scmp.eq.s32.totalorder %s31, 4
      %p206 = pnand %p204, %p205
      %p207 = pneg %p206
      %s208 = scalar_select %p207, 1, 0
      %s209 = smul.u32 %s32, %s208
      %p210 = scmp.eq.s32.totalorder %s49, 1
      %p211 = scmp.eq.s32.totalorder %s45, 4
      %p212 = pnand %p210, %p211
      %p213 = pneg %p212
      %s214 = scalar_select %p213, 1, 0
      %s215 = smul.u32 %s41, %s214
      %s216 = ssub.s32 %s209, %s215
      %p217 = scmp.eq.s32.totalorder %s216, 0
      %s219 = sadd.s32 %s218, 1
      %s220 = scalar_select %p217, %s218, %s219
      %p223 = pneg %p217
      %p224 = scmp.eq.s32.totalorder %s23, 9
      %p225 = por %p223, %p224
      %p226 = scmp.ne.s32.totalorder %s218, %s221
      %p227 = scmp.eq.s32.totalorder %s23, 0
      %p228 = por %p226, %p227
      %p229 = scmp.ne.s32.totalorder %s218, %s221
      %p230 = scmp.eq.s32.totalorder %s28, 9
      %p231 = por %p229, %p230
      %p232 = scmp.ne.s32.totalorder %s221, %s222
      %p233 = scmp.eq.s32.totalorder %s28, 0
      %p234 = por %p232, %p233
      %p235 = scmp.ne.s32.totalorder %s221, %s222
      %p236 = scmp.eq.s32.totalorder %s29, 9
      %p237 = por %p235, %p236
      %p239 = scmp.ne.s32.totalorder %s222, %s238
      %p240 = scmp.eq.s32.totalorder %s29, 0
      %p241 = por %p239, %p240
      %p242 = scmp.le.s32.totalorder 1, %s23
      %p243 = scmp.lt.s32.totalorder %s23, 11
      %p244 = pnand %p242, %p243
      %p245 = pneg %p244
      // Predicated region
      $region9: #{net_forward.1} parent=5 // pred_check
        _
      $region10: #{net_forward.1} parent=5 // pred_check_branch
        %247 = sbr.rel (%p244) target = $region12
      $region11: #{net_forward.1} parent=5 // pred_region
        %s248 = ssub.s32 %s23, 1
        // Predicated region
        $region13: #{net_forward.1} parent=11 // pred_check
          %p249 = pneg %p133
        $region14: #{net_forward.1} parent=11 // pred_check_branch
          %251 = sbr.rel (%p249) target = $region16
        $region15: #{net_forward.1} parent=11 // pred_region
          %s253 = ssub.s32 1024, 1024
          %254 = vsyncadd [#allocation9], %s253
          %s255 = sshll.u32 [#allocation10], 4
          %s256 = int_to_ptr.vmem [resolvable:$true] %s255
          %261 = dma.hbm_to_vmem [thread:$0]  %s2, 1024, %s256, [#allocation9], 64, 64, 4
        $region16: #{net_forward.1} parent=11 // pred_fallthru
          _
        // Predicated region
        $region17: #{net_forward.1} parent=11 // pred_check
          %p262 = pneg %p154
        $region18: #{net_forward.1} parent=11 // pred_check_branch
          %264 = sbr.rel (%p262) target = $region20
        $region19: #{net_forward.1} parent=11 // pred_region
          %s266 = ssub.s32 16, 16
          %267 = vsyncadd [#allocation12], %s266
          %s269 = sshll.u32 [#allocation11], 4
          %s270 = int_to_ptr.vmem [resolvable:$true] %s269
          %272 = dma.hbm_to_vmem [thread:$0]  %s3, 16, %s270, [#allocation12]
        $region20: #{net_forward.1} parent=11 // pred_fallthru
          _
        // Predicated region
        $region21: #{net_forward.1} parent=11 // pred_check
          %p273 = pneg %p175
        $region22: #{net_forward.1} parent=11 // pred_check_branch
          %275 = sbr.rel (%p273) target = $region24
        $region23: #{net_forward.1} parent=11 // pred_region
          %s277 = ssub.s32 1024, 1024
          %278 = vsyncadd [#allocation12], %s277
          %s279 = sshll.u32 [#allocation13], 4
          %s280 = int_to_ptr.vmem [resolvable:$true] %s279
          %285 = dma.hbm_to_vmem [thread:$0]  %s4, 1024, %s280, [#allocation12], 64, 64, 4
        $region24: #{net_forward.1} parent=11 // pred_fallthru
          _
        // Predicated region
        $region25: #{net_forward.1} parent=11 // pred_check
          %p286 = pneg %p196
        $region26: #{net_forward.1} parent=11 // pred_check_branch
          %288 = sbr.rel (%p286) target = $region28
        $region27: #{net_forward.1} parent=11 // pred_region
          %s290 = ssub.s32 16, 16
          %291 = vsyncadd [#allocation15], %s290
          %s293 = sshll.u32 [#allocation14], 4
          %s294 = int_to_ptr.vmem [resolvable:$true] %s293
          %296 = dma.hbm_to_vmem [thread:$0]  %s5, 16, %s294, [#allocation15]
        $region28: #{net_forward.1} parent=11 // pred_fallthru
          _
      $region12: #{net_forward.1} parent=5 // pred_fallthru
        _
      %p297 = scmp.lt.s32.totalorder %s23, 10
      // Predicated region
      $region29: #{net_forward.1} parent=5 // pred_check
        %p298 = pneg %p297
      $region30: #{net_forward.1} parent=5 // pred_check_branch
        %300 = sbr.rel (%p298) target = $region32
      $region31: #{net_forward.1} parent=5 // pred_region
        // Predicated region
        $region33: #{net_forward.1} parent=31 // pred_check
          %p301 = pneg %p74
        $region34: #{net_forward.1} parent=31 // pred_check_branch
          %303 = sbr.rel (%p301) target = $region36
        $region35: #{net_forward.1} parent=31 // pred_region
          %s304 = sand.u32 %s64, 1
          %s305 = scalar_lea.sflag [#allocation6], %s304
          %s306 = sand.u32 %s64, 1
          %s307 = smul.addr %s306, 64
          %s308 = scalar_lea.vmem [#allocation5], %s307
          %p309 = scmp.eq.s32.totalorder %s30, 0
          %p310 = scmp.eq.s32.totalorder %s31, 0
          %p311 = pnand %p309, %p310
          %p312 = pneg %p311
          %s313 = scalar_select %p312, 1, 0
          %s314 = smul.u32 %s32, %s313
          %s315 = smul.u32 16, %s314
          %s317 = ssub.s32 1024, 1024
          %318 = vsyncadd %s305, %s317
          %s319 = smul.addr %s315, 64
          %s320 = scalar_lea.hbm %s0, %s319
          %s321 = sshll.u32 %s308, 4
          %s322 = int_to_ptr.vmem [resolvable:$true] %s321
          %327 = dma.hbm_to_vmem [thread:$0]  %s320, 1024, %s322, %s305, 64, 64, 4
        $region36: #{net_forward.1} parent=31 // pred_fallthru
          _
        // Predicated region
        $region37: #{net_forward.1} parent=31 // pred_check
          %p328 = pneg %p106
        $region38: #{net_forward.1} parent=31 // pred_check_branch
          %330 = sbr.rel (%p328) target = $region40
        $region39: #{net_forward.1} parent=31 // pred_region
          %s331 = sand.u32 %s23, 1
          %s332 = scalar_lea.sflag [#allocation9], %s331
          %s333 = sand.u32 %s96, 1
          %s334 = smul.addr %s333, 64
          %s335 = scalar_lea.vmem [#allocation8], %s334
          %p336 = scmp.gt.s32.totalorder %s31, 0
          %s337 = scalar_select %p336, 1, 0
          %s338 = smul.u32 %s32, %s337
          %s339 = smul.u32 16, %s338
          %s341 = ssub.s32 1024, 1024
          %342 = vsyncadd %s332, %s341
          %s343 = smul.addr %s339, 64
          %s344 = scalar_lea.hbm %s1, %s343
          %s345 = sshll.u32 %s335, 4
          %s346 = int_to_ptr.vmem [resolvable:$true] %s345
          %351 = dma.hbm_to_vmem [thread:$0]  %s344, 1024, %s346, %s332, 64, 64, 4
        $region40: #{net_forward.1} parent=31 // pred_fallthru
          _
      $region32: #{net_forward.1} parent=5 // pred_fallthru
        _
      %p352 = scmp.le.s32.totalorder 1, %s23
      %p353 = scmp.lt.s32.totalorder %s23, 11
      %p354 = pnand %p352, %p353
      %p355 = pneg %p354
      // Predicated region
      $region41: #{net_forward.1} parent=5 // pred_check
        _
      $region42: #{net_forward.1} parent=5 // pred_check_branch
        %357 = sbr.rel (%p354) target = $region44
      $region43: #{net_forward.1} parent=5 // pred_region
        %s358 = ssub.s32 %s23, 1
        %s359 = sand.u32 %s67, 1
        %s360 = scalar_lea.sflag [#allocation6], %s359
        %s361 = sand.u32 %s67, 1
        %s362 = smul.addr %s361, 64
        %s363 = scalar_lea.vmem [#allocation5], %s362
        // Predicated region
        $region45: #{net_forward.1} parent=43 // pred_check
          %p364 = pneg %p80
        $region46: #{net_forward.1} parent=43 // pred_check_branch
          %366 = sbr.rel (%p364) target = $region48
        $region47: #{net_forward.1} parent=43 // pred_region
          %367 = dma.done %s360, 1024
        $region48: #{net_forward.1} parent=43 // pred_fallthru
          _
        %s368 = sand.u32 %s28, 1
        %s369 = scalar_lea.sflag [#allocation9], %s368
        %s370 = sand.u32 %s99, 1
        %s371 = smul.addr %s370, 64
        %s372 = scalar_lea.vmem [#allocation8], %s371
        // Predicated region
        $region49: #{net_forward.1} parent=43 // pred_check
          %p373 = pneg %p112
        $region50: #{net_forward.1} parent=43 // pred_check_branch
          %375 = sbr.rel (%p373) target = $region52
        $region51: #{net_forward.1} parent=43 // pred_region
          %376 = dma.done %s369, 1024
        $region52: #{net_forward.1} parent=43 // pred_fallthru
          _
        // Predicated region
        $region53: #{net_forward.1} parent=43 // pred_check
          %p377 = pneg %p133
        $region54: #{net_forward.1} parent=43 // pred_check_branch
          %379 = sbr.rel (%p377) target = $region56
        $region55: #{net_forward.1} parent=43 // pred_region
          %380 = dma.done [#allocation9], 1024
        $region56: #{net_forward.1} parent=43 // pred_fallthru
          _
        // Predicated region
        $region57: #{net_forward.1} parent=43 // pred_check
          %p381 = pneg %p154
        $region58: #{net_forward.1} parent=43 // pred_check_branch
          %383 = sbr.rel (%p381) target = $region60
        $region59: #{net_forward.1} parent=43 // pred_region
          %384 = dma.done [#allocation12], 16
        $region60: #{net_forward.1} parent=43 // pred_fallthru
          _
        // Predicated region
        $region61: #{net_forward.1} parent=43 // pred_check
          %p385 = pneg %p175
        $region62: #{net_forward.1} parent=43 // pred_check_branch
          %387 = sbr.rel (%p385) target = $region64
        $region63: #{net_forward.1} parent=43 // pred_region
          %388 = dma.done [#allocation12], 1024
        $region64: #{net_forward.1} parent=43 // pred_fallthru
          _
        // Predicated region
        $region65: #{net_forward.1} parent=43 // pred_check
          %p389 = pneg %p196
        $region66: #{net_forward.1} parent=43 // pred_check_branch
          %391 = sbr.rel (%p389) target = $region68
        $region67: #{net_forward.1} parent=43 // pred_region
          %392 = dma.done [#allocation15], 16
        $region68: #{net_forward.1} parent=43 // pred_fallthru
          _
        %s393 = sand.u32 %s67, 1
        %s394 = scalar_lea.sflag [#allocation6], %s393
        %s395 = sand.u32 %s67, 1
        %s396 = smul.addr %s395, 64
        %s397 = scalar_lea.vmem [#allocation5], %s396
        %p398 = pneg %p80
        %p399 = pneg %p77
        %s400 = sand.u32 %s28, 1
        %s401 = scalar_lea.sflag [#allocation9], %s400
        %s402 = sand.u32 %s99, 1
        %s403 = smul.addr %s402, 64
        %s404 = scalar_lea.vmem [#allocation8], %s403
        %p405 = pneg %p112
        %p406 = pneg %p109
        %p407 = pneg %p133
        %p408 = pneg %p130
        %p409 = pneg %p154
        %p410 = pneg %p151
        %p411 = pneg %p175
        %p412 = pneg %p172
        %p413 = pneg %p196
        %p414 = pneg %p193
        %p415 = pneg %p234
        %p416 = pneg %p231
        %s417 = sand.u32 %s221, 1
        %s418 = scalar_lea.sflag [#allocation7], %s417
        %s419 = sand.u32 %s221, 1
        %s420 = smul.addr %s419, 128
        %s421 = scalar_lea.vmem [#allocation16], %s420
        %p422 = scmp.eq.s32.totalorder %s33, 0
        %p423 = scmp.eq.s32.totalorder %s34, 0
        %p424 = pnand %p422, %p423
        %p425 = pneg %p424
        %s426 = scalar_select %p425, 1, 0
        %s427 = smul.u32 %s35, %s426
        %s428 = smul.u32 16, %s427
        %p429 = scmp.gt.s32.totalorder %s34, 0
        %s430 = scalar_select %p429, 1, 0
        %s431 = smul.u32 %s35, %s430
        %s432 = smul.u32 16, %s431
        %p433 = scmp.eq.s32.totalorder %s33, 1
        %p434 = scmp.eq.s32.totalorder %s34, 4
        %p435 = pnand %p433, %p434
        %p436 = pneg %p435
        %s437 = scalar_select %p436, 1, 0
        %s438 = smul.u32 %s35, %s437
        %s439 = smul.u32 16, %s438
        %s441 = smul.u32 %s35, 128
        %p442 = scmp.eq.s32.totalorder %s34, 0
        // Predicated region
        $region69: #{net_forward.1} parent=43 // pred_check
          %p443 = pneg %p442
        $region70: #{net_forward.1} parent=43 // pred_check_branch
          %445 = sbr.rel (%p443) target = $region72
        $region71: #{net_forward.1} parent=43 // pred_region
          %p446 = scmp.eq.s32.totalorder %s33, 0
          // Predicated region
          $region73: #{net_forward.1} parent=71 // pred_check
            %p447 = pneg %p446
          $region74: #{net_forward.1} parent=71 // pred_check_branch
            %449 = sbr.rel (%p447) target = $region76
          $region75: #{net_forward.1} parent=71 // pred_region
            %v450 = vld [vmem:[%s363] sm:$0xf]
            %v451 = vld [vmem:[%s363 + $0x4] sm:$0xf]
            %v452 = vld [vmem:[%s363 + $0x8] sm:$0xf]
            %v453 = vld [vmem:[%s363 + $0xc] sm:$0xf]
            %v454 = vld [vmem:[%s363 + $0x10] sm:$0xf]
            %v455 = vld [vmem:[%s363 + $0x14] sm:$0xf]
            %v456 = vld [vmem:[%s363 + $0x18] sm:$0xf]
            %v457 = vld [vmem:[%s363 + $0x1c] sm:$0xf]
            %v458 = vld [vmem:[%s363 + $0x20] sm:$0xf]
            %v459 = vld [vmem:[%s363 + $0x24] sm:$0xf]
            %v460 = vld [vmem:[%s363 + $0x28] sm:$0xf]
            %v461 = vld [vmem:[%s363 + $0x2c] sm:$0xf]
            %v462 = vld [vmem:[%s363 + $0x30] sm:$0xf]
            %v463 = vld [vmem:[%s363 + $0x34] sm:$0xf]
            %v464 = vld [vmem:[%s363 + $0x38] sm:$0xf]
            %v465 = vld [vmem:[%s363 + $0x3c] sm:$0xf]
            %v466 = vld [vmem:[#allocation10] sm:$0xf]
            %v467 = vld [vmem:[#allocation10 + $0x4] sm:$0xf]
            %v468 = vld [vmem:[#allocation10 + $0x8] sm:$0xf]
            %v469 = vld [vmem:[#allocation10 + $0xc] sm:$0xf]
            %v470 = vld [vmem:[#allocation10 + $0x10] sm:$0xf]
            %v471 = vld [vmem:[#allocation10 + $0x14] sm:$0xf]
            %v472 = vld [vmem:[#allocation10 + $0x18] sm:$0xf]
            %v473 = vld [vmem:[#allocation10 + $0x1c] sm:$0xf]
            %v474 = vld [vmem:[#allocation10 + $0x20] sm:$0xf]
            %v475 = vld [vmem:[#allocation10 + $0x24] sm:$0xf]
            %v476 = vld [vmem:[#allocation10 + $0x28] sm:$0xf]
            %v477 = vld [vmem:[#allocation10 + $0x2c] sm:$0xf]
            %v478 = vld [vmem:[#allocation10 + $0x30] sm:$0xf]
            %v479 = vld [vmem:[#allocation10 + $0x34] sm:$0xf]
            %v480 = vld [vmem:[#allocation10 + $0x38] sm:$0xf]
            %v481 = vld [vmem:[#allocation10 + $0x3c] sm:$0xf]
            %v482 = vld [vmem:[#allocation11] sm:$0x1]
            %v484 = vlaneseq
            %v485 = vshrl.u32 %v484, 7
            %v486 = vsub.s32 0, %v485
            %v487 = vrot.slane %v482, %v486
            %v505 = vunpack.c.l.b16 %v450
            %v506 = vunpack.c.l.b16 %v451
            %v507 = vunpack.c.l.b16 %v452
            %v508 = vunpack.c.l.b16 %v453
            %v509 = vunpack.c.l.b16 %v454
            %v510 = vunpack.c.l.b16 %v455
            %v511 = vunpack.c.l.b16 %v456
            %v512 = vunpack.c.l.b16 %v457
            %v513 = vunpack.c.l.b16 %v458
            %v514 = vunpack.c.l.b16 %v459
            %v515 = vunpack.c.l.b16 %v460
            %v516 = vunpack.c.l.b16 %v461
            %v517 = vunpack.c.l.b16 %v462
            %v518 = vunpack.c.l.b16 %v463
            %v519 = vunpack.c.l.b16 %v464
            %v520 = vunpack.c.l.b16 %v465
            %v521 = vpack.c.b16 %v506, %v505
            %v522 = vpack.c.b16 %v508, %v507
            %v523 = vpack.c.b16 %v510, %v509
            %v524 = vpack.c.b16 %v512, %v511
            %v525 = vpack.c.b16 %v514, %v513
            %v526 = vpack.c.b16 %v516, %v515
            %v527 = vpack.c.b16 %v518, %v517
            %v528 = vpack.c.b16 %v520, %v519
            %v553 = vunpack.c.l.b16 %v466
            %v554 = vunpack.c.l.b16 %v467
            %v555 = vunpack.c.l.b16 %v468
            %v556 = vunpack.c.l.b16 %v469
            %v557 = vunpack.c.l.b16 %v470
            %v558 = vunpack.c.l.b16 %v471
            %v559 = vunpack.c.l.b16 %v472
            %v560 = vunpack.c.l.b16 %v473
            %v561 = vunpack.c.l.b16 %v474
            %v562 = vunpack.c.l.b16 %v475
            %v563 = vunpack.c.l.b16 %v476
            %v564 = vunpack.c.l.b16 %v477
            %v565 = vunpack.c.l.b16 %v478
            %v566 = vunpack.c.l.b16 %v479
            %v567 = vunpack.c.l.b16 %v480
            %v568 = vunpack.c.l.b16 %v481
            %v569 = vpack.c.b16 %v554, %v553
            %v570 = vpack.c.b16 %v556, %v555
            %v571 = vpack.c.b16 %v558, %v557
            %v572 = vpack.c.b16 %v560, %v559
            %v573 = vpack.c.b16 %v562, %v561
            %v574 = vpack.c.b16 %v564, %v563
            %v575 = vpack.c.b16 %v566, %v565
            %v576 = vpack.c.b16 %v568, %v567
            %585 = vmatprep.subr.bf16.mxu0 0
            %586 = vmatpush1.bf16.msra.mxu0 %v569
            %587 = vmatprep.subr.bf16.mxu0 0
            %588 = vmatpush1.bf16.msra.mxu0 %v570
            %589 = vmatprep.subr.bf16.mxu0 0
            %590 = vmatpush1.bf16.msra.mxu0 %v571
            %591 = vmatprep.subr.bf16.mxu0 0
            %592 = vmatpush1.bf16.msra.mxu0 %v572
            %593 = vmatprep.subr.bf16.mxu0 0
            %594 = vmatpush1.bf16.msra.mxu0 %v573
            %595 = vmatprep.subr.bf16.mxu0 0
            %596 = vmatpush1.bf16.msra.mxu0 %v574
            %597 = vmatprep.subr.bf16.mxu0 0
            %598 = vmatpush1.bf16.msra.mxu0 %v575
            %599 = vmatprep.subr.bf16.mxu0 0
            %600 = vmatpush1.bf16.msra.mxu0 %v576
            %601 = vmatprep.subr.bf16.mxu0 0
            %602 = vmatpush1.bf16.msra.mxu0 0
            %603 = vmatprep.subr.bf16.mxu0 0
            %604 = vmatpush1.bf16.msra.mxu0 0
            %605 = vmatprep.subr.bf16.mxu0 0
            %606 = vmatpush1.bf16.msra.mxu0 0
            %607 = vmatprep.subr.bf16.mxu0 0
            %608 = vmatpush1.bf16.msra.mxu0 0
            %609 = vmatprep.subr.bf16.mxu0 0
            %610 = vmatpush1.bf16.msra.mxu0 0
            %611 = vmatprep.subr.bf16.mxu0 0
            %612 = vmatpush1.bf16.msra.mxu0 0
            %613 = vmatprep.subr.bf16.mxu0 0
            %614 = vmatpush1.bf16.msra.mxu0 0
            %615 = vmatprep.subr.bf16.mxu0 0
            %616 = vmatpush1.bf16.msra.mxu0 0
            %617 = vmatprep.mubr.bf16.mxu0 0
            %618 = vmatmul.mubr.bf16.gmra.mrb[0].mxu0 %v521
            %v619 = vpop.f32.mrb[0].mxu0
            %v620 = vadd.f32 %v487, %v619
            %v621 = vpop.f32.mrb[0].mxu0
            %v622 = vpop.f32.mrb[0].mxu0
            %v623 = vadd.f32 %v487, %v622
            %v624 = vpop.f32.mrb[0].mxu0
            %625 = vmatprep.mubr.bf16.mxu0 0
            %626 = vmatmul.mubr.bf16.gmra.mrb[0].mxu0 %v522
            %v627 = vpop.f32.mrb[0].mxu0
            %v628 = vadd.f32 %v487, %v627
            %v629 = vpop.f32.mrb[0].mxu0
            %v630 = vpop.f32.mrb[0].mxu0
            %v631 = vadd.f32 %v487, %v630
            %v632 = vpop.f32.mrb[0].mxu0
            %633 = vmatprep.mubr.bf16.mxu0 0
            %634 = vmatmul.mubr.bf16.gmra.mrb[0].mxu0 %v523
            %v635 = vpop.f32.mrb[0].mxu0
            %v636 = vadd.f32 %v487, %v635
            %v637 = vpop.f32.mrb[0].mxu0
            %v638 = vpop.f32.mrb[0].mxu0
            %v639 = vadd.f32 %v487, %v638
            %v640 = vpop.f32.mrb[0].mxu0
            %641 = vmatprep.mubr.bf16.mxu0 0
            %642 = vmatmul.mubr.bf16.gmra.mrb[0].mxu0 %v524
            %v643 = vpop.f32.mrb[0].mxu0
            %v644 = vadd.f32 %v487, %v643
            %v645 = vpop.f32.mrb[0].mxu0
            %v646 = vpop.f32.mrb[0].mxu0
            %v647 = vadd.f32 %v487, %v646
            %v648 = vpop.f32.mrb[0].mxu0
            %649 = vmatprep.mubr.bf16.mxu0 0
            %650 = vmatmul.mubr.bf16.gmra.mrb[0].mxu0 %v525
            %v651 = vpop.f32.mrb[0].mxu0
            %v652 = vadd.f32 %v487, %v651
            %v653 = vpop.f32.mrb[0].mxu0
            %v654 = vpop.f32.mrb[0].mxu0
            %v655 = vadd.f32 %v487, %v654
            %v656 = vpop.f32.mrb[0].mxu0
            %657 = vmatprep.mubr.bf16.mxu0 0
            %658 = vmatmul.mubr.bf16.gmra.mrb[0].mxu0 %v526
            %v659 = vpop.f32.mrb[0].mxu0
            %v660 = vadd.f32 %v487, %v659
            %v661 = vpop.f32.mrb[0].mxu0
            %v662 = vpop.f32.mrb[0].mxu0
            %v663 = vadd.f32 %v487, %v662
            %v664 = vpop.f32.mrb[0].mxu0
            %665 = vmatprep.mubr.bf16.mxu0 0
            %666 = vmatmul.mubr.bf16.gmra.mrb[0].mxu0 %v527
            %v667 = vpop.f32.mrb[0].mxu0
            %v668 = vadd.f32 %v487, %v667
            %v669 = vpop.f32.mrb[0].mxu0
            %v670 = vpop.f32.mrb[0].mxu0
            %v671 = vadd.f32 %v487, %v670
            %v672 = vpop.f32.mrb[0].mxu0
            %673 = vmatprep.mubr.bf16.mxu0 0
            %674 = vmatmul.mubr.bf16.gmra.mrb[0].mxu0 %v528
            %v675 = vpop.f32.mrb[0].mxu0
            %v676 = vadd.f32 %v487, %v675
            %v677 = vpop.f32.mrb[0].mxu0
            %v678 = vpop.f32.mrb[0].mxu0
            %v679 = vadd.f32 %v487, %v678
            %v680 = vpop.f32.mrb[0].mxu0
            %681 = vdwg.mxu0
            %v682 = vpack.c.bf16 %v623, %v620
            %v683 = vpack.c.bf16 %v631, %v628
            %v684 = vpack.c.bf16 %v639, %v636
            %v685 = vpack.c.bf16 %v647, %v644
            %v686 = vpack.c.bf16 %v655, %v652
            %v687 = vpack.c.bf16 %v663, %v660
            %v688 = vpack.c.bf16 %v671, %v668
            %v689 = vpack.c.bf16 %v679, %v676
            %s690 = sshra.s32 %s441, 4
            %s691 = sand.u32 %s441, 15
            %s692 = smul.addr %s690, 8
            %s693 = scalar_lea.vmem [#allocation2], %s692
            %694 = vst [vmem:[%s693] sm:$0xff] %v682
            %695 = vst [vmem:[%s693 + $0x8] sm:$0xff] %v683
            %696 = vst [vmem:[%s693 + $0x10] sm:$0xff] %v684
            %697 = vst [vmem:[%s693 + $0x18] sm:$0xff] %v685
            %698 = vst [vmem:[%s693 + $0x20] sm:$0xff] %v686
            %699 = vst [vmem:[%s693 + $0x28] sm:$0xff] %v687
            %700 = vst [vmem:[%s693 + $0x30] sm:$0xff] %v688
            %701 = vst [vmem:[%s693 + $0x38] sm:$0xff] %v689
            %v702 = vmul.f32 %v620, 0.6666667
            %v703 = vmul.f32 %v623, 0.6666667
            %v704 = vmul.f32 %v628, 0.6666667
            %v705 = vmul.f32 %v631, 0.6666667
            %v706 = vmul.f32 %v636, 0.6666667
            %v707 = vmul.f32 %v639, 0.6666667
            %v708 = vmul.f32 %v644, 0.6666667
            %v709 = vmul.f32 %v647, 0.6666667
            %v710 = vmul.f32 %v652, 0.6666667
            %v711 = vmul.f32 %v655, 0.6666667
            %v712 = vmul.f32 %v660, 0.6666667
            %v713 = vmul.f32 %v663, 0.6666667
            %v714 = vmul.f32 %v668, 0.6666667
            %v715 = vmul.f32 %v671, 0.6666667
            %v716 = vmul.f32 %v676, 0.6666667
            %v717 = vmul.f32 %v679, 0.6666667
            %s718 = scalar_lea.vmem [#allocation4], %s441
            %719 = vst [vmem:[%s718] sm:$0xff] %v702
            %720 = vst [vmem:[%s718 + $0x8] sm:$0xff] %v703
            %721 = vst [vmem:[%s718 + $0x10] sm:$0xff] %v704
            %722 = vst [vmem:[%s718 + $0x18] sm:$0xff] %v705
            %723 = vst [vmem:[%s718 + $0x20] sm:$0xff] %v706
            %724 = vst [vmem:[%s718 + $0x28] sm:$0xff] %v707
            %725 = vst [vmem:[%s718 + $0x30] sm:$0xff] %v708
            %726 = vst [vmem:[%s718 + $0x38] sm:$0xff] %v709
            %727 = vst [vmem:[%s718 + $0x40] sm:$0xff] %v710
            %728 = vst [vmem:[%s718 + $0x48] sm:$0xff] %v711
            %729 = vst [vmem:[%s718 + $0x50] sm:$0xff] %v712
            %730 = vst [vmem:[%s718 + $0x58] sm:$0xff] %v713
            %731 = vst [vmem:[%s718 + $0x60] sm:$0xff] %v714
            %732 = vst [vmem:[%s718 + $0x68] sm:$0xff] %v715
            %733 = vst [vmem:[%s718 + $0x70] sm:$0xff] %v716
            %734 = vst [vmem:[%s718 + $0x78] sm:$0xff] %v717
          $region76: #{net_forward.1} parent=71 // pred_fallthru
            _
          %p735 = scmp.eq.s32.totalorder %s33, 1
          // Predicated region
          $region77: #{net_forward.1} parent=71 // pred_check
            %p736 = pneg %p735
          $region78: #{net_forward.1} parent=71 // pred_check_branch
            %738 = sbr.rel (%p736) target = $region80
          $region79: #{net_forward.1} parent=71 // pred_region
            %s739 = sshra.s32 %s441, 4
            %s740 = sand.u32 %s441, 15
            %s741 = smul.addr %s739, 8
            %s742 = scalar_lea.vmem [#allocation2], %s741
            %v743 = vld [vmem:[%s742] sm:$0xff]
            %v744 = vld [vmem:[%s742 + $0x8] sm:$0xff]
            %v745 = vld [vmem:[%s742 + $0x10] sm:$0xff]
            %v746 = vld [vmem:[%s742 + $0x18] sm:$0xff]
            %v747 = vld [vmem:[%s742 + $0x20] sm:$0xff]
            %v748 = vld [vmem:[%s742 + $0x28] sm:$0xff]
            %v749 = vld [vmem:[%s742 + $0x30] sm:$0xff]
            %v750 = vld [vmem:[%s742 + $0x38] sm:$0xff]
            %v751 = vld [vmem:[#allocation13] sm:$0xf]
            %v752 = vld [vmem:[#allocation13 + $0x4] sm:$0xf]
            %v753 = vld [vmem:[#allocation13 + $0x8] sm:$0xf]
            %v754 = vld [vmem:[#allocation13 + $0xc] sm:$0xf]
            %v755 = vld [vmem:[#allocation13 + $0x10] sm:$0xf]
            %v756 = vld [vmem:[#allocation13 + $0x14] sm:$0xf]
            %v757 = vld [vmem:[#allocation13 + $0x18] sm:$0xf]
            %v758 = vld [vmem:[#allocation13 + $0x1c] sm:$0xf]
            %v759 = vld [vmem:[#allocation13 + $0x20] sm:$0xf]
            %v760 = vld [vmem:[#allocation13 + $0x24] sm:$0xf]
            %v761 = vld [vmem:[#allocation13 + $0x28] sm:$0xf]
            %v762 = vld [vmem:[#allocation13 + $0x2c] sm:$0xf]
            %v763 = vld [vmem:[#allocation13 + $0x30] sm:$0xf]
            %v764 = vld [vmem:[#allocation13 + $0x34] sm:$0xf]
            %v765 = vld [vmem:[#allocation13 + $0x38] sm:$0xf]
            %v766 = vld [vmem:[#allocation13 + $0x3c] sm:$0xf]
            %v767 = vld [vmem:[#allocation14] sm:$0x1]
            %v769 = vlaneseq
            %v770 = vshrl.u32 %v769, 7
            %v771 = vsub.s32 0, %v770
            %v772 = vrot.slane %v767, %v771
            %v790 = vunpack.c.l.b16 %v751
            %v791 = vunpack.c.l.b16 %v752
            %v792 = vunpack.c.l.b16 %v753
            %v793 = vunpack.c.l.b16 %v754
            %v794 = vunpack.c.l.b16 %v755
            %v795 = vunpack.c.l.b16 %v756
            %v796 = vunpack.c.l.b16 %v757
            %v797 = vunpack.c.l.b16 %v758
            %v798 = vunpack.c.l.b16 %v759
            %v799 = vunpack.c.l.b16 %v760
            %v800 = vunpack.c.l.b16 %v761
            %v801 = vunpack.c.l.b16 %v762
            %v802 = vunpack.c.l.b16 %v763
            %v803 = vunpack.c.l.b16 %v764
            %v804 = vunpack.c.l.b16 %v765
            %v805 = vunpack.c.l.b16 %v766
            %v806 = vpack.c.b16 %v791, %v790
            %v807 = vpack.c.b16 %v793, %v792
            %v808 = vpack.c.b16 %v795, %v794
            %v809 = vpack.c.b16 %v797, %v796
            %v810 = vpack.c.b16 %v799, %v798
            %v811 = vpack.c.b16 %v801, %v800
            %v812 = vpack.c.b16 %v803, %v802
            %v813 = vpack.c.b16 %v805, %v804
            %822 = vmatprep.subr.bf16.mxu0 0
            %823 = vmatpush1.bf16.msra.mxu0 %v806
            %824 = vmatprep.subr.bf16.mxu0 0
            %825 = vmatpush1.bf16.msra.mxu0 %v807
            %826 = vmatprep.subr.bf16.mxu0 0
            %827 = vmatpush1.bf16.msra.mxu0 %v808
            %828 = vmatprep.subr.bf16.mxu0 0
            %829 = vmatpush1.bf16.msra.mxu0 %v809
            %830 = vmatprep.subr.bf16.mxu0 0
            %831 = vmatpush1.bf16.msra.mxu0 %v810
            %832 = vmatprep.subr.bf16.mxu0 0
            %833 = vmatpush1.bf16.msra.mxu0 %v811
            %834 = vmatprep.subr.bf16.mxu0 0
            %835 = vmatpush1.bf16.msra.mxu0 %v812
            %836 = vmatprep.subr.bf16.mxu0 0
            %837 = vmatpush1.bf16.msra.mxu0 %v813
            %838 = vmatprep.subr.bf16.mxu0 0
            %839 = vmatpush1.bf16.msra.mxu0 0
            %840 = vmatprep.subr.bf16.mxu0 0
            %841 = vmatpush1.bf16.msra.mxu0 0
            %842 = vmatprep.subr.bf16.mxu0 0
            %843 = vmatpush1.bf16.msra.mxu0 0
            %844 = vmatprep.subr.bf16.mxu0 0
            %845 = vmatpush1.bf16.msra.mxu0 0
            %846 = vmatprep.subr.bf16.mxu0 0
            %847 = vmatpush1.bf16.msra.mxu0 0
            %848 = vmatprep.subr.bf16.mxu0 0
            %849 = vmatpush1.bf16.msra.mxu0 0
            %850 = vmatprep.subr.bf16.mxu0 0
            %851 = vmatpush1.bf16.msra.mxu0 0
            %852 = vmatprep.subr.bf16.mxu0 0
            %853 = vmatpush1.bf16.msra.mxu0 0
            %854 = vmatprep.mubr.bf16.mxu0 0
            %855 = vmatmul.mubr.bf16.gmra.mrb[0].mxu0 %v743
            %v856 = vpop.f32.mrb[0].mxu0
            %v857 = vadd.f32 %v772, %v856
            %v858 = vpop.f32.mrb[0].mxu0
            %v859 = vpop.f32.mrb[0].mxu0
            %v860 = vadd.f32 %v772, %v859
            %v861 = vpop.f32.mrb[0].mxu0
            %862 = vmatprep.mubr.bf16.mxu0 0
            %863 = vmatmul.mubr.bf16.gmra.mrb[0].mxu0 %v744
            %v864 = vpop.f32.mrb[0].mxu0
            %v865 = vadd.f32 %v772, %v864
            %v866 = vpop.f32.mrb[0].mxu0
            %v867 = vpop.f32.mrb[0].mxu0
            %v868 = vadd.f32 %v772, %v867
            %v869 = vpop.f32.mrb[0].mxu0
            %870 = vmatprep.mubr.bf16.mxu0 0
            %871 = vmatmul.mubr.bf16.gmra.mrb[0].mxu0 %v745
            %v872 = vpop.f32.mrb[0].mxu0
            %v873 = vadd.f32 %v772, %v872
            %v874 = vpop.f32.mrb[0].mxu0
            %v875 = vpop.f32.mrb[0].mxu0
            %v876 = vadd.f32 %v772, %v875
            %v877 = vpop.f32.mrb[0].mxu0
            %878 = vmatprep.mubr.bf16.mxu0 0
            %879 = vmatmul.mubr.bf16.gmra.mrb[0].mxu0 %v746
            %v880 = vpop.f32.mrb[0].mxu0
            %v881 = vadd.f32 %v772, %v880
            %v882 = vpop.f32.mrb[0].mxu0
            %v883 = vpop.f32.mrb[0].mxu0
            %v884 = vadd.f32 %v772, %v883
            %v885 = vpop.f32.mrb[0].mxu0
            %886 = vmatprep.mubr.bf16.mxu0 0
            %887 = vmatmul.mubr.bf16.gmra.mrb[0].mxu0 %v747
            %v888 = vpop.f32.mrb[0].mxu0
            %v889 = vadd.f32 %v772, %v888
            %v890 = vpop.f32.mrb[0].mxu0
            %v891 = vpop.f32.mrb[0].mxu0
            %v892 = vadd.f32 %v772, %v891
            %v893 = vpop.f32.mrb[0].mxu0
            %894 = vmatprep.mubr.bf16.mxu0 0
            %895 = vmatmul.mubr.bf16.gmra.mrb[0].mxu0 %v748
            %v896 = vpop.f32.mrb[0].mxu0
            %v897 = vadd.f32 %v772, %v896
            %v898 = vpop.f32.mrb[0].mxu0
            %v899 = vpop.f32.mrb[0].mxu0
            %v900 = vadd.f32 %v772, %v899
            %v901 = vpop.f32.mrb[0].mxu0
            %902 = vmatprep.mubr.bf16.mxu0 0
            %903 = vmatmul.mubr.bf16.gmra.mrb[0].mxu0 %v749
            %v904 = vpop.f32.mrb[0].mxu0
            %v905 = vadd.f32 %v772, %v904
            %v906 = vpop.f32.mrb[0].mxu0
            %v907 = vpop.f32.mrb[0].mxu0
            %v908 = vadd.f32 %v772, %v907
            %v909 = vpop.f32.mrb[0].mxu0
            %910 = vmatprep.mubr.bf16.mxu0 0
            %911 = vmatmul.mubr.bf16.gmra.mrb[0].mxu0 %v750
            %v912 = vpop.f32.mrb[0].mxu0
            %v913 = vadd.f32 %v772, %v912
            %v914 = vpop.f32.mrb[0].mxu0
            %v915 = vpop.f32.mrb[0].mxu0
            %v916 = vadd.f32 %v772, %v915
            %v917 = vpop.f32.mrb[0].mxu0
            %918 = vdwg.mxu0
            %v919 = vpack.c.bf16 %v860, %v857
            %v920 = vpack.c.bf16 %v868, %v865
            %v921 = vpack.c.bf16 %v876, %v873
            %v922 = vpack.c.bf16 %v884, %v881
            %v923 = vpack.c.bf16 %v892, %v889
            %v924 = vpack.c.bf16 %v900, %v897
            %v925 = vpack.c.bf16 %v908, %v905
            %v926 = vpack.c.bf16 %v916, %v913
            %927 = vst [vmem:[%s742] sm:$0xff] %v919
            %928 = vst [vmem:[%s742 + $0x8] sm:$0xff] %v920
            %929 = vst [vmem:[%s742 + $0x10] sm:$0xff] %v921
            %930 = vst [vmem:[%s742 + $0x18] sm:$0xff] %v922
            %931 = vst [vmem:[%s742 + $0x20] sm:$0xff] %v923
            %932 = vst [vmem:[%s742 + $0x28] sm:$0xff] %v924
            %933 = vst [vmem:[%s742 + $0x30] sm:$0xff] %v925
            %934 = vst [vmem:[%s742 + $0x38] sm:$0xff] %v926
            %v935 = vmul.f32 %v857, 0.6666667
            %v936 = vmul.f32 %v860, 0.6666667
            %v937 = vmul.f32 %v865, 0.6666667
            %v938 = vmul.f32 %v868, 0.6666667
            %v939 = vmul.f32 %v873, 0.6666667
            %v940 = vmul.f32 %v876, 0.6666667
            %v941 = vmul.f32 %v881, 0.6666667
            %v942 = vmul.f32 %v884, 0.6666667
            %v943 = vmul.f32 %v889, 0.6666667
            %v944 = vmul.f32 %v892, 0.6666667
            %v945 = vmul.f32 %v897, 0.6666667
            %v946 = vmul.f32 %v900, 0.6666667
            %v947 = vmul.f32 %v905, 0.6666667
            %v948 = vmul.f32 %v908, 0.6666667
            %v949 = vmul.f32 %v913, 0.6666667
            %v950 = vmul.f32 %v916, 0.6666667
            %s951 = scalar_lea.vmem [#allocation4], %s441
            %952 = vst [vmem:[%s951] sm:$0xff] %v935
            %953 = vst [vmem:[%s951 + $0x8] sm:$0xff] %v936
            %954 = vst [vmem:[%s951 + $0x10] sm:$0xff] %v937
            %955 = vst [vmem:[%s951 + $0x18] sm:$0xff] %v938
            %956 = vst [vmem:[%s951 + $0x20] sm:$0xff] %v939
            %957 = vst [vmem:[%s951 + $0x28] sm:$0xff] %v940
            %958 = vst [vmem:[%s951 + $0x30] sm:$0xff] %v941
            %959 = vst [vmem:[%s951 + $0x38] sm:$0xff] %v942
            %960 = vst [vmem:[%s951 + $0x40] sm:$0xff] %v943
            %961 = vst [vmem:[%s951 + $0x48] sm:$0xff] %v944
            %962 = vst [vmem:[%s951 + $0x50] sm:$0xff] %v945
            %963 = vst [vmem:[%s951 + $0x58] sm:$0xff] %v946
            %964 = vst [vmem:[%s951 + $0x60] sm:$0xff] %v947
            %965 = vst [vmem:[%s951 + $0x68] sm:$0xff] %v948
            %966 = vst [vmem:[%s951 + $0x70] sm:$0xff] %v949
            %967 = vst [vmem:[%s951 + $0x78] sm:$0xff] %v950
          $region80: #{net_forward.1} parent=71 // pred_fallthru
            _
        $region72: #{net_forward.1} parent=43 // pred_fallthru
          _
        %p968 = scmp.gt.s32.totalorder %s34, 0
        %p969 = scmp.lt.s32.totalorder %s34, 0
        %s970 = ssub.s32 0, %s34
        %s971 = scalar_select %p969, %s970, %s34
        %s972 = sand.u32 %s971, 1
        %s973 = ssub.s32 0, %s972
        %s974 = scalar_select %p969, %s973, %s972
        %p975 = scmp.ne.s32.totalorder %s974, 0
        %p976 = scmp.lt.s32.totalorder %s974, 0
        %p977 = pnand %p976, %p975
        %p978 = pneg %p977
        %s979 = sadd.s32 %s974, 2
        %s980 = scalar_select %p978, %s979, %s974
        %p981 = scmp.eq.s32.totalorder %s980, 1
        %p982 = pnand %p968, %p981
        %p983 = pneg %p982
        // Predicated region
        $region81: #{net_forward.1} parent=43 // pred_check
          _
        $region82: #{net_forward.1} parent=43 // pred_check_branch
          %985 = sbr.rel (%p982) target = $region84
        $region83: #{net_forward.1} parent=43 // pred_region
          %v986 = vld [vmem:[%s372] sm:$0xf]
          %v987 = vld [vmem:[%s372 + $0x4] sm:$0xf]
          %v988 = vld [vmem:[%s372 + $0x8] sm:$0xf]
          %v989 = vld [vmem:[%s372 + $0xc] sm:$0xf]
          %v990 = vld [vmem:[%s372 + $0x10] sm:$0xf]
          %v991 = vld [vmem:[%s372 + $0x14] sm:$0xf]
          %v992 = vld [vmem:[%s372 + $0x18] sm:$0xf]
          %v993 = vld [vmem:[%s372 + $0x1c] sm:$0xf]
          %v994 = vld [vmem:[%s372 + $0x20] sm:$0xf]
          %v995 = vld [vmem:[%s372 + $0x24] sm:$0xf]
          %v996 = vld [vmem:[%s372 + $0x28] sm:$0xf]
          %v997 = vld [vmem:[%s372 + $0x2c] sm:$0xf]
          %v998 = vld [vmem:[%s372 + $0x30] sm:$0xf]
          %v999 = vld [vmem:[%s372 + $0x34] sm:$0xf]
          %v1000 = vld [vmem:[%s372 + $0x38] sm:$0xf]
          %v1001 = vld [vmem:[%s372 + $0x3c] sm:$0xf]
          %v1002 = vld [vmem:[#allocation2] sm:$0xff]
          %v1003 = vld [vmem:[#allocation2 + $0x8] sm:$0xff]
          %v1004 = vld [vmem:[#allocation2 + $0x10] sm:$0xff]
          %v1005 = vld [vmem:[#allocation2 + $0x18] sm:$0xff]
          %v1006 = vld [vmem:[#allocation2 + $0x20] sm:$0xff]
          %v1007 = vld [vmem:[#allocation2 + $0x28] sm:$0xff]
          %v1008 = vld [vmem:[#allocation2 + $0x30] sm:$0xff]
          %v1009 = vld [vmem:[#allocation2 + $0x38] sm:$0xff]
          %v1026 = vunpack.c.l.b16 %v986
          %v1027 = vunpack.c.l.b16 %v987
          %v1028 = vunpack.c.l.b16 %v988
          %v1029 = vunpack.c.l.b16 %v989
          %v1030 = vunpack.c.l.b16 %v990
          %v1031 = vunpack.c.l.b16 %v991
          %v1032 = vunpack.c.l.b16 %v992
          %v1033 = vunpack.c.l.b16 %v993
          %v1034 = vunpack.c.l.b16 %v994
          %v1035 = vunpack.c.l.b16 %v995
          %v1036 = vunpack.c.l.b16 %v996
          %v1037 = vunpack.c.l.b16 %v997
          %v1038 = vunpack.c.l.b16 %v998
          %v1039 = vunpack.c.l.b16 %v999
          %v1040 = vunpack.c.l.b16 %v1000
          %v1041 = vunpack.c.l.b16 %v1001
          %v1042 = vpack.c.b16 %v1027, %v1026
          %v1043 = vpack.c.b16 %v1029, %v1028
          %v1044 = vpack.c.b16 %v1031, %v1030
          %v1045 = vpack.c.b16 %v1033, %v1032
          %v1046 = vpack.c.b16 %v1035, %v1034
          %v1047 = vpack.c.b16 %v1037, %v1036
          %v1048 = vpack.c.b16 %v1039, %v1038
          %v1049 = vpack.c.b16 %v1041, %v1040
          %1058 = vmatprep.subr.bf16.mxu0 0
          %1059 = vmatpush1.bf16.msra.mxu0 %v1002
          %1060 = vmatprep.subr.bf16.mxu0 0
          %1061 = vmatpush1.bf16.msra.mxu0 %v1003
          %1062 = vmatprep.subr.bf16.mxu0 0
          %1063 = vmatpush1.bf16.msra.mxu0 %v1004
          %1064 = vmatprep.subr.bf16.mxu0 0
          %1065 = vmatpush1.bf16.msra.mxu0 %v1005
          %1066 = vmatprep.subr.bf16.mxu0 0
          %1067 = vmatpush1.bf16.msra.mxu0 %v1006
          %1068 = vmatprep.subr.bf16.mxu0 0
          %1069 = vmatpush1.bf16.msra.mxu0 %v1007
          %1070 = vmatprep.subr.bf16.mxu0 0
          %1071 = vmatpush1.bf16.msra.mxu0 %v1008
          %1072 = vmatprep.subr.bf16.mxu0 0
          %1073 = vmatpush1.bf16.msra.mxu0 %v1009
          %1074 = vmatprep.subr.bf16.mxu0 0
          %1075 = vmatpush1.bf16.msra.mxu0 0
          %1076 = vmatprep.subr.bf16.mxu0 0
          %1077 = vmatpush1.bf16.msra.mxu0 0
          %1078 = vmatprep.subr.bf16.mxu0 0
          %1079 = vmatpush1.bf16.msra.mxu0 0
          %1080 = vmatprep.subr.bf16.mxu0 0
          %1081 = vmatpush1.bf16.msra.mxu0 0
          %1082 = vmatprep.subr.bf16.mxu0 0
          %1083 = vmatpush1.bf16.msra.mxu0 0
          %1084 = vmatprep.subr.bf16.mxu0 0
          %1085 = vmatpush1.bf16.msra.mxu0 0
          %1086 = vmatprep.subr.bf16.mxu0 0
          %1087 = vmatpush1.bf16.msra.mxu0 0
          %1088 = vmatprep.subr.bf16.mxu0 0
          %1089 = vmatpush1.bf16.msra.mxu0 0
          %1090 = vmatprep.mubr.bf16.mxu0 0
          %1091 = vmatmul.mubr.bf16.gmra.mrb[0].mxu0 %v1042
          %v1092 = vpop.f32.mrb[0].mxu0
          %v1093 = vadd.f32 0.0, %v1092
          %v1094 = vpop.f32.mrb[0].mxu0
          %v1095 = vpop.f32.mrb[0].mxu0
          %v1096 = vadd.f32 0.0, %v1095
          %v1097 = vpop.f32.mrb[0].mxu0
          %1098 = vmatprep.mubr.bf16.mxu0 0
          %1099 = vmatmul.mubr.bf16.gmra.mrb[0].mxu0 %v1043
          %v1100 = vpop.f32.mrb[0].mxu0
          %v1101 = vadd.f32 0.0, %v1100
          %v1102 = vpop.f32.mrb[0].mxu0
          %v1103 = vpop.f32.mrb[0].mxu0
          %v1104 = vadd.f32 0.0, %v1103
          %v1105 = vpop.f32.mrb[0].mxu0
          %1106 = vmatprep.mubr.bf16.mxu0 0
          %1107 = vmatmul.mubr.bf16.gmra.mrb[0].mxu0 %v1044
          %v1108 = vpop.f32.mrb[0].mxu0
          %v1109 = vadd.f32 0.0, %v1108
          %v1110 = vpop.f32.mrb[0].mxu0
          %v1111 = vpop.f32.mrb[0].mxu0
          %v1112 = vadd.f32 0.0, %v1111
          %v1113 = vpop.f32.mrb[0].mxu0
          %1114 = vmatprep.mubr.bf16.mxu0 0
          %1115 = vmatmul.mubr.bf16.gmra.mrb[0].mxu0 %v1045
          %v1116 = vpop.f32.mrb[0].mxu0
          %v1117 = vadd.f32 0.0, %v1116
          %v1118 = vpop.f32.mrb[0].mxu0
          %v1119 = vpop.f32.mrb[0].mxu0
          %v1120 = vadd.f32 0.0, %v1119
          %v1121 = vpop.f32.mrb[0].mxu0
          %1122 = vmatprep.mubr.bf16.mxu0 0
          %1123 = vmatmul.mubr.bf16.gmra.mrb[0].mxu0 %v1046
          %v1124 = vpop.f32.mrb[0].mxu0
          %v1125 = vadd.f32 0.0, %v1124
          %v1126 = vpop.f32.mrb[0].mxu0
          %v1127 = vpop.f32.mrb[0].mxu0
          %v1128 = vadd.f32 0.0, %v1127
          %v1129 = vpop.f32.mrb[0].mxu0
          %1130 = vmatprep.mubr.bf16.mxu0 0
          %1131 = vmatmul.mubr.bf16.gmra.mrb[0].mxu0 %v1047
          %v1132 = vpop.f32.mrb[0].mxu0
          %v1133 = vadd.f32 0.0, %v1132
          %v1134 = vpop.f32.mrb[0].mxu0
          %v1135 = vpop.f32.mrb[0].mxu0
          %v1136 = vadd.f32 0.0, %v1135
          %v1137 = vpop.f32.mrb[0].mxu0
          %1138 = vmatprep.mubr.bf16.mxu0 0
          %1139 = vmatmul.mubr.bf16.gmra.mrb[0].mxu0 %v1048
          %v1140 = vpop.f32.mrb[0].mxu0
          %v1141 = vadd.f32 0.0, %v1140
          %v1142 = vpop.f32.mrb[0].mxu0
          %v1143 = vpop.f32.mrb[0].mxu0
          %v1144 = vadd.f32 0.0, %v1143
          %v1145 = vpop.f32.mrb[0].mxu0
          %1146 = vmatprep.mubr.bf16.mxu0 0
          %1147 = vmatmul.mubr.bf16.gmra.mrb[0].mxu0 %v1049
          %v1148 = vpop.f32.mrb[0].mxu0
          %v1149 = vadd.f32 0.0, %v1148
          %v1150 = vpop.f32.mrb[0].mxu0
          %v1151 = vpop.f32.mrb[0].mxu0
          %v1152 = vadd.f32 0.0, %v1151
          %v1153 = vpop.f32.mrb[0].mxu0
          %1154 = vdwg.mxu0
          %v1155 = vmul.f32 %v1093, 0.33333334
          %v1156 = vmul.f32 %v1096, 0.33333334
          %v1157 = vmul.f32 %v1101, 0.33333334
          %v1158 = vmul.f32 %v1104, 0.33333334
          %v1159 = vmul.f32 %v1109, 0.33333334
          %v1160 = vmul.f32 %v1112, 0.33333334
          %v1161 = vmul.f32 %v1117, 0.33333334
          %v1162 = vmul.f32 %v1120, 0.33333334
          %v1163 = vmul.f32 %v1125, 0.33333334
          %v1164 = vmul.f32 %v1128, 0.33333334
          %v1165 = vmul.f32 %v1133, 0.33333334
          %v1166 = vmul.f32 %v1136, 0.33333334
          %v1167 = vmul.f32 %v1141, 0.33333334
          %v1168 = vmul.f32 %v1144, 0.33333334
          %v1169 = vmul.f32 %v1149, 0.33333334
          %v1170 = vmul.f32 %v1152, 0.33333334
          %s1171 = scalar_lea.vmem [#allocation4], %s441
          %v1172 = vld [vmem:[%s1171] sm:$0xff]
          %v1173 = vld [vmem:[%s1171 + $0x8] sm:$0xff]
          %v1174 = vld [vmem:[%s1171 + $0x10] sm:$0xff]
          %v1175 = vld [vmem:[%s1171 + $0x18] sm:$0xff]
          %v1176 = vld [vmem:[%s1171 + $0x20] sm:$0xff]
          %v1177 = vld [vmem:[%s1171 + $0x28] sm:$0xff]
          %v1178 = vld [vmem:[%s1171 + $0x30] sm:$0xff]
          %v1179 = vld [vmem:[%s1171 + $0x38] sm:$0xff]
          %v1180 = vld [vmem:[%s1171 + $0x40] sm:$0xff]
          %v1181 = vld [vmem:[%s1171 + $0x48] sm:$0xff]
          %v1182 = vld [vmem:[%s1171 + $0x50] sm:$0xff]
          %v1183 = vld [vmem:[%s1171 + $0x58] sm:$0xff]
          %v1184 = vld [vmem:[%s1171 + $0x60] sm:$0xff]
          %v1185 = vld [vmem:[%s1171 + $0x68] sm:$0xff]
          %v1186 = vld [vmem:[%s1171 + $0x70] sm:$0xff]
          %v1187 = vld [vmem:[%s1171 + $0x78] sm:$0xff]
          %v1188 = vadd.f32 %v1155, %v1172
          %v1189 = vadd.f32 %v1156, %v1173
          %v1190 = vadd.f32 %v1157, %v1174
          %v1191 = vadd.f32 %v1158, %v1175
          %v1192 = vadd.f32 %v1159, %v1176
          %v1193 = vadd.f32 %v1160, %v1177
          %v1194 = vadd.f32 %v1161, %v1178
          %v1195 = vadd.f32 %v1162, %v1179
          %v1196 = vadd.f32 %v1163, %v1180
          %v1197 = vadd.f32 %v1164, %v1181
          %v1198 = vadd.f32 %v1165, %v1182
          %v1199 = vadd.f32 %v1166, %v1183
          %v1200 = vadd.f32 %v1167, %v1184
          %v1201 = vadd.f32 %v1168, %v1185
          %v1202 = vadd.f32 %v1169, %v1186
          %v1203 = vadd.f32 %v1170, %v1187
          %v1204 = vpack.c.bf16 %v1189, %v1188
          %v1205 = vpack.c.bf16 %v1191, %v1190
          %v1206 = vpack.c.bf16 %v1193, %v1192
          %v1207 = vpack.c.bf16 %v1195, %v1194
          %v1208 = vpack.c.bf16 %v1197, %v1196
          %v1209 = vpack.c.bf16 %v1199, %v1198
          %v1210 = vpack.c.bf16 %v1201, %v1200
          %v1211 = vpack.c.bf16 %v1203, %v1202
          %s1212 = sshra.s32 %s441, 4
          %s1213 = sand.u32 %s441, 15
          %s1214 = smul.addr %s1212, 8
          %s1215 = scalar_lea.vmem [#allocation3], %s1214
          %1216 = vst [vmem:[%s1215] sm:$0xff] %v1204
          %1217 = vst [vmem:[%s1215 + $0x8] sm:$0xff] %v1205
          %1218 = vst [vmem:[%s1215 + $0x10] sm:$0xff] %v1206
          %1219 = vst [vmem:[%s1215 + $0x18] sm:$0xff] %v1207
          %1220 = vst [vmem:[%s1215 + $0x20] sm:$0xff] %v1208
          %1221 = vst [vmem:[%s1215 + $0x28] sm:$0xff] %v1209
          %1222 = vst [vmem:[%s1215 + $0x30] sm:$0xff] %v1210
          %1223 = vst [vmem:[%s1215 + $0x38] sm:$0xff] %v1211
        $region84: #{net_forward.1} parent=43 // pred_fallthru
          _
        %p1224 = scmp.eq.s32.totalorder %s980, 0
        %p1225 = pnand %p968, %p1224
        %p1226 = pneg %p1225
        // Predicated region
        $region85: #{net_forward.1} parent=43 // pred_check
          _
        $region86: #{net_forward.1} parent=43 // pred_check_branch
          %1228 = sbr.rel (%p1225) target = $region88
        $region87: #{net_forward.1} parent=43 // pred_region
          %v1229 = vld [vmem:[%s372] sm:$0xf]
          %v1230 = vld [vmem:[%s372 + $0x4] sm:$0xf]
          %v1231 = vld [vmem:[%s372 + $0x8] sm:$0xf]
          %v1232 = vld [vmem:[%s372 + $0xc] sm:$0xf]
          %v1233 = vld [vmem:[%s372 + $0x10] sm:$0xf]
          %v1234 = vld [vmem:[%s372 + $0x14] sm:$0xf]
          %v1235 = vld [vmem:[%s372 + $0x18] sm:$0xf]
          %v1236 = vld [vmem:[%s372 + $0x1c] sm:$0xf]
          %v1237 = vld [vmem:[%s372 + $0x20] sm:$0xf]
          %v1238 = vld [vmem:[%s372 + $0x24] sm:$0xf]
          %v1239 = vld [vmem:[%s372 + $0x28] sm:$0xf]
          %v1240 = vld [vmem:[%s372 + $0x2c] sm:$0xf]
          %v1241 = vld [vmem:[%s372 + $0x30] sm:$0xf]
          %v1242 = vld [vmem:[%s372 + $0x34] sm:$0xf]
          %v1243 = vld [vmem:[%s372 + $0x38] sm:$0xf]
          %v1244 = vld [vmem:[%s372 + $0x3c] sm:$0xf]
          %v1245 = vld [vmem:[#allocation3] sm:$0xff]
          %v1246 = vld [vmem:[#allocation3 + $0x8] sm:$0xff]
          %v1247 = vld [vmem:[#allocation3 + $0x10] sm:$0xff]
          %v1248 = vld [vmem:[#allocation3 + $0x18] sm:$0xff]
          %v1249 = vld [vmem:[#allocation3 + $0x20] sm:$0xff]
          %v1250 = vld [vmem:[#allocation3 + $0x28] sm:$0xff]
          %v1251 = vld [vmem:[#allocation3 + $0x30] sm:$0xff]
          %v1252 = vld [vmem:[#allocation3 + $0x38] sm:$0xff]
          %v1269 = vunpack.c.l.b16 %v1229
          %v1270 = vunpack.c.l.b16 %v1230
          %v1271 = vunpack.c.l.b16 %v1231
          %v1272 = vunpack.c.l.b16 %v1232
          %v1273 = vunpack.c.l.b16 %v1233
          %v1274 = vunpack.c.l.b16 %v1234
          %v1275 = vunpack.c.l.b16 %v1235
          %v1276 = vunpack.c.l.b16 %v1236
          %v1277 = vunpack.c.l.b16 %v1237
          %v1278 = vunpack.c.l.b16 %v1238
          %v1279 = vunpack.c.l.b16 %v1239
          %v1280 = vunpack.c.l.b16 %v1240
          %v1281 = vunpack.c.l.b16 %v1241
          %v1282 = vunpack.c.l.b16 %v1242
          %v1283 = vunpack.c.l.b16 %v1243
          %v1284 = vunpack.c.l.b16 %v1244
          %v1285 = vpack.c.b16 %v1270, %v1269
          %v1286 = vpack.c.b16 %v1272, %v1271
          %v1287 = vpack.c.b16 %v1274, %v1273
          %v1288 = vpack.c.b16 %v1276, %v1275
          %v1289 = vpack.c.b16 %v1278, %v1277
          %v1290 = vpack.c.b16 %v1280, %v1279
          %v1291 = vpack.c.b16 %v1282, %v1281
          %v1292 = vpack.c.b16 %v1284, %v1283
          %1301 = vmatprep.subr.bf16.mxu0 0
          %1302 = vmatpush1.bf16.msra.mxu0 %v1245
          %1303 = vmatprep.subr.bf16.mxu0 0
          %1304 = vmatpush1.bf16.msra.mxu0 %v1246
          %1305 = vmatprep.subr.bf16.mxu0 0
          %1306 = vmatpush1.bf16.msra.mxu0 %v1247
          %1307 = vmatprep.subr.bf16.mxu0 0
          %1308 = vmatpush1.bf16.msra.mxu0 %v1248
          %1309 = vmatprep.subr.bf16.mxu0 0
          %1310 = vmatpush1.bf16.msra.mxu0 %v1249
          %1311 = vmatprep.subr.bf16.mxu0 0
          %1312 = vmatpush1.bf16.msra.mxu0 %v1250
          %1313 = vmatprep.subr.bf16.mxu0 0
          %1314 = vmatpush1.bf16.msra.mxu0 %v1251
          %1315 = vmatprep.subr.bf16.mxu0 0
          %1316 = vmatpush1.bf16.msra.mxu0 %v1252
          %1317 = vmatprep.subr.bf16.mxu0 0
          %1318 = vmatpush1.bf16.msra.mxu0 0
          %1319 = vmatprep.subr.bf16.mxu0 0
          %1320 = vmatpush1.bf16.msra.mxu0 0
          %1321 = vmatprep.subr.bf16.mxu0 0
          %1322 = vmatpush1.bf16.msra.mxu0 0
          %1323 = vmatprep.subr.bf16.mxu0 0
          %1324 = vmatpush1.bf16.msra.mxu0 0
          %1325 = vmatprep.subr.bf16.mxu0 0
          %1326 = vmatpush1.bf16.msra.mxu0 0
          %1327 = vmatprep.subr.bf16.mxu0 0
          %1328 = vmatpush1.bf16.msra.mxu0 0
          %1329 = vmatprep.subr.bf16.mxu0 0
          %1330 = vmatpush1.bf16.msra.mxu0 0
          %1331 = vmatprep.subr.bf16.mxu0 0
          %1332 = vmatpush1.bf16.msra.mxu0 0
          %1333 = vmatprep.mubr.bf16.mxu0 0
          %1334 = vmatmul.mubr.bf16.gmra.mrb[0].mxu0 %v1285
          %v1335 = vpop.f32.mrb[0].mxu0
          %v1336 = vadd.f32 0.0, %v1335
          %v1337 = vpop.f32.mrb[0].mxu0
          %v1338 = vpop.f32.mrb[0].mxu0
          %v1339 = vadd.f32 0.0, %v1338
          %v1340 = vpop.f32.mrb[0].mxu0
          %1341 = vmatprep.mubr.bf16.mxu0 0
          %1342 = vmatmul.mubr.bf16.gmra.mrb[0].mxu0 %v1286
          %v1343 = vpop.f32.mrb[0].mxu0
          %v1344 = vadd.f32 0.0, %v1343
          %v1345 = vpop.f32.mrb[0].mxu0
          %v1346 = vpop.f32.mrb[0].mxu0
          %v1347 = vadd.f32 0.0, %v1346
          %v1348 = vpop.f32.mrb[0].mxu0
          %1349 = vmatprep.mubr.bf16.mxu0 0
          %1350 = vmatmul.mubr.bf16.gmra.mrb[0].mxu0 %v1287
          %v1351 = vpop.f32.mrb[0].mxu0
          %v1352 = vadd.f32 0.0, %v1351
          %v1353 = vpop.f32.mrb[0].mxu0
          %v1354 = vpop.f32.mrb[0].mxu0
          %v1355 = vadd.f32 0.0, %v1354
          %v1356 = vpop.f32.mrb[0].mxu0
          %1357 = vmatprep.mubr.bf16.mxu0 0
          %1358 = vmatmul.mubr.bf16.gmra.mrb[0].mxu0 %v1288
          %v1359 = vpop.f32.mrb[0].mxu0
          %v1360 = vadd.f32 0.0, %v1359
          %v1361 = vpop.f32.mrb[0].mxu0
          %v1362 = vpop.f32.mrb[0].mxu0
          %v1363 = vadd.f32 0.0, %v1362
          %v1364 = vpop.f32.mrb[0].mxu0
          %1365 = vmatprep.mubr.bf16.mxu0 0
          %1366 = vmatmul.mubr.bf16.gmra.mrb[0].mxu0 %v1289
          %v1367 = vpop.f32.mrb[0].mxu0
          %v1368 = vadd.f32 0.0, %v1367
          %v1369 = vpop.f32.mrb[0].mxu0
          %v1370 = vpop.f32.mrb[0].mxu0
          %v1371 = vadd.f32 0.0, %v1370
          %v1372 = vpop.f32.mrb[0].mxu0
          %1373 = vmatprep.mubr.bf16.mxu0 0
          %1374 = vmatmul.mubr.bf16.gmra.mrb[0].mxu0 %v1290
          %v1375 = vpop.f32.mrb[0].mxu0
          %v1376 = vadd.f32 0.0, %v1375
          %v1377 = vpop.f32.mrb[0].mxu0
          %v1378 = vpop.f32.mrb[0].mxu0
          %v1379 = vadd.f32 0.0, %v1378
          %v1380 = vpop.f32.mrb[0].mxu0
          %1381 = vmatprep.mubr.bf16.mxu0 0
          %1382 = vmatmul.mubr.bf16.gmra.mrb[0].mxu0 %v1291
          %v1383 = vpop.f32.mrb[0].mxu0
          %v1384 = vadd.f32 0.0, %v1383
          %v1385 = vpop.f32.mrb[0].mxu0
          %v1386 = vpop.f32.mrb[0].mxu0
          %v1387 = vadd.f32 0.0, %v1386
          %v1388 = vpop.f32.mrb[0].mxu0
          %1389 = vmatprep.mubr.bf16.mxu0 0
          %1390 = vmatmul.mubr.bf16.gmra.mrb[0].mxu0 %v1292
          %v1391 = vpop.f32.mrb[0].mxu0
          %v1392 = vadd.f32 0.0, %v1391
          %v1393 = vpop.f32.mrb[0].mxu0
          %v1394 = vpop.f32.mrb[0].mxu0
          %v1395 = vadd.f32 0.0, %v1394
          %v1396 = vpop.f32.mrb[0].mxu0
          %1397 = vdwg.mxu0
          %v1398 = vmul.f32 %v1336, 0.33333334
          %v1399 = vmul.f32 %v1339, 0.33333334
          %v1400 = vmul.f32 %v1344, 0.33333334
          %v1401 = vmul.f32 %v1347, 0.33333334
          %v1402 = vmul.f32 %v1352, 0.33333334
          %v1403 = vmul.f32 %v1355, 0.33333334
          %v1404 = vmul.f32 %v1360, 0.33333334
          %v1405 = vmul.f32 %v1363, 0.33333334
          %v1406 = vmul.f32 %v1368, 0.33333334
          %v1407 = vmul.f32 %v1371, 0.33333334
          %v1408 = vmul.f32 %v1376, 0.33333334
          %v1409 = vmul.f32 %v1379, 0.33333334
          %v1410 = vmul.f32 %v1384, 0.33333334
          %v1411 = vmul.f32 %v1387, 0.33333334
          %v1412 = vmul.f32 %v1392, 0.33333334
          %v1413 = vmul.f32 %v1395, 0.33333334
          %s1414 = scalar_lea.vmem [#allocation4], %s441
          %v1415 = vld [vmem:[%s1414] sm:$0xff]
          %v1416 = vld [vmem:[%s1414 + $0x8] sm:$0xff]
          %v1417 = vld [vmem:[%s1414 + $0x10] sm:$0xff]
          %v1418 = vld [vmem:[%s1414 + $0x18] sm:$0xff]
          %v1419 = vld [vmem:[%s1414 + $0x20] sm:$0xff]
          %v1420 = vld [vmem:[%s1414 + $0x28] sm:$0xff]
          %v1421 = vld [vmem:[%s1414 + $0x30] sm:$0xff]
          %v1422 = vld [vmem:[%s1414 + $0x38] sm:$0xff]
          %v1423 = vld [vmem:[%s1414 + $0x40] sm:$0xff]
          %v1424 = vld [vmem:[%s1414 + $0x48] sm:$0xff]
          %v1425 = vld [vmem:[%s1414 + $0x50] sm:$0xff]
          %v1426 = vld [vmem:[%s1414 + $0x58] sm:$0xff]
          %v1427 = vld [vmem:[%s1414 + $0x60] sm:$0xff]
          %v1428 = vld [vmem:[%s1414 + $0x68] sm:$0xff]
          %v1429 = vld [vmem:[%s1414 + $0x70] sm:$0xff]
          %v1430 = vld [vmem:[%s1414 + $0x78] sm:$0xff]
          %v1431 = vadd.f32 %v1398, %v1415
          %v1432 = vadd.f32 %v1399, %v1416
          %v1433 = vadd.f32 %v1400, %v1417
          %v1434 = vadd.f32 %v1401, %v1418
          %v1435 = vadd.f32 %v1402, %v1419
          %v1436 = vadd.f32 %v1403, %v1420
          %v1437 = vadd.f32 %v1404, %v1421
          %v1438 = vadd.f32 %v1405, %v1422
          %v1439 = vadd.f32 %v1406, %v1423
          %v1440 = vadd.f32 %v1407, %v1424
          %v1441 = vadd.f32 %v1408, %v1425
          %v1442 = vadd.f32 %v1409, %v1426
          %v1443 = vadd.f32 %v1410, %v1427
          %v1444 = vadd.f32 %v1411, %v1428
          %v1445 = vadd.f32 %v1412, %v1429
          %v1446 = vadd.f32 %v1413, %v1430
          %v1447 = vpack.c.bf16 %v1432, %v1431
          %v1448 = vpack.c.bf16 %v1434, %v1433
          %v1449 = vpack.c.bf16 %v1436, %v1435
          %v1450 = vpack.c.bf16 %v1438, %v1437
          %v1451 = vpack.c.bf16 %v1440, %v1439
          %v1452 = vpack.c.bf16 %v1442, %v1441
          %v1453 = vpack.c.bf16 %v1444, %v1443
          %v1454 = vpack.c.bf16 %v1446, %v1445
          %s1455 = sshra.s32 %s441, 4
          %s1456 = sand.u32 %s441, 15
          %s1457 = smul.addr %s1455, 8
          %s1458 = scalar_lea.vmem [#allocation2], %s1457
          %1459 = vst [vmem:[%s1458] sm:$0xff] %v1447
          %1460 = vst [vmem:[%s1458 + $0x8] sm:$0xff] %v1448
          %1461 = vst [vmem:[%s1458 + $0x10] sm:$0xff] %v1449
          %1462 = vst [vmem:[%s1458 + $0x18] sm:$0xff] %v1450
          %1463 = vst [vmem:[%s1458 + $0x20] sm:$0xff] %v1451
          %1464 = vst [vmem:[%s1458 + $0x28] sm:$0xff] %v1452
          %1465 = vst [vmem:[%s1458 + $0x30] sm:$0xff] %v1453
          %1466 = vst [vmem:[%s1458 + $0x38] sm:$0xff] %v1454
        $region88: #{net_forward.1} parent=43 // pred_fallthru
          _
        %p1467 = scmp.eq.s32.totalorder %s33, 1
        %p1468 = scmp.eq.s32.totalorder %s34, 4
        %p1469 = pnand %p1467, %p1468
        %p1470 = pneg %p1469
        // Predicated region
        $region89: #{net_forward.1} parent=43 // pred_check
          _
        $region90: #{net_forward.1} parent=43 // pred_check_branch
          %1472 = sbr.rel (%p1469) target = $region92
        $region91: #{net_forward.1} parent=43 // pred_region
          %s1473 = sshra.s32 %s441, 4
          %s1474 = sand.u32 %s441, 15
          %s1475 = smul.addr %s1473, 8
          %s1476 = scalar_lea.vmem [#allocation2], %s1475
          %v1477 = vld [vmem:[%s1476] sm:$0xff]
          %v1478 = vld [vmem:[%s1476 + $0x8] sm:$0xff]
          %v1479 = vld [vmem:[%s1476 + $0x10] sm:$0xff]
          %v1480 = vld [vmem:[%s1476 + $0x18] sm:$0xff]
          %v1481 = vld [vmem:[%s1476 + $0x20] sm:$0xff]
          %v1482 = vld [vmem:[%s1476 + $0x28] sm:$0xff]
          %v1483 = vld [vmem:[%s1476 + $0x30] sm:$0xff]
          %v1484 = vld [vmem:[%s1476 + $0x38] sm:$0xff]
          %v1485 = vunpack.c.l.bf16 %v1477
          %v1486 = vunpack.c.h.bf16 %v1477
          %v1487 = vunpack.c.l.bf16 %v1478
          %v1488 = vunpack.c.h.bf16 %v1478
          %v1489 = vunpack.c.l.bf16 %v1479
          %v1490 = vunpack.c.h.bf16 %v1479
          %v1491 = vunpack.c.l.bf16 %v1480
          %v1492 = vunpack.c.h.bf16 %v1480
          %v1493 = vunpack.c.l.bf16 %v1481
          %v1494 = vunpack.c.h.bf16 %v1481
          %v1495 = vunpack.c.l.bf16 %v1482
          %v1496 = vunpack.c.h.bf16 %v1482
          %v1497 = vunpack.c.l.bf16 %v1483
          %v1498 = vunpack.c.h.bf16 %v1483
          %v1499 = vunpack.c.l.bf16 %v1484
          %v1500 = vunpack.c.h.bf16 %v1484
          %v1501 = vlaneseq
          %v1502 = vand.u32 %v1501, 127
          %vm1503 = vcmp.lt.s32.totalorder %v1502, 4
          %v1504 = vsel %vm1503, %v1485, -1e+30
          %v1505 = vsel %vm1503, %v1486, -1e+30
          %v1506 = vsel %vm1503, %v1487, -1e+30
          %v1507 = vsel %vm1503, %v1488, -1e+30
          %v1508 = vsel %vm1503, %v1489, -1e+30
          %v1509 = vsel %vm1503, %v1490, -1e+30
          %v1510 = vsel %vm1503, %v1491, -1e+30
          %v1511 = vsel %vm1503, %v1492, -1e+30
          %v1512 = vsel %vm1503, %v1493, -1e+30
          %v1513 = vsel %vm1503, %v1494, -1e+30
          %v1514 = vsel %vm1503, %v1495, -1e+30
          %v1515 = vsel %vm1503, %v1496, -1e+30
          %v1516 = vsel %vm1503, %v1497, -1e+30
          %v1517 = vsel %vm1503, %v1498, -1e+30
          %v1518 = vsel %vm1503, %v1499, -1e+30
          %v1519 = vsel %vm1503, %v1500, -1e+30
          %1520 = vmax.xlane.f32.xlu0 %v1504
          %v1521 = vpop.xlane.xlu0 %1520
          %1522 = vmax.xlane.f32.xlu0 %v1505
          %v1523 = vpop.xlane.xlu0 %1522
          %1524 = vmax.xlane.f32.xlu0 %v1506
          %v1525 = vpop.xlane.xlu0 %1524
          %1526 = vmax.xlane.f32.xlu0 %v1507
          %v1527 = vpop.xlane.xlu0 %1526
          %1528 = vmax.xlane.f32.xlu0 %v1508
          %v1529 = vpop.xlane.xlu0 %1528
          %1530 = vmax.xlane.f32.xlu0 %v1509
          %v1531 = vpop.xlane.xlu0 %1530
          %1532 = vmax.xlane.f32.xlu0 %v1510
          %v1533 = vpop.xlane.xlu0 %1532
          %1534 = vmax.xlane.f32.xlu0 %v1511
          %v1535 = vpop.xlane.xlu0 %1534
          %1536 = vmax.xlane.f32.xlu0 %v1512
          %v1537 = vpop.xlane.xlu0 %1536
          %1538 = vmax.xlane.f32.xlu0 %v1513
          %v1539 = vpop.xlane.xlu0 %1538
          %1540 = vmax.xlane.f32.xlu0 %v1514
          %v1541 = vpop.xlane.xlu0 %1540
          %1542 = vmax.xlane.f32.xlu0 %v1515
          %v1543 = vpop.xlane.xlu0 %1542
          %1544 = vmax.xlane.f32.xlu0 %v1516
          %v1545 = vpop.xlane.xlu0 %1544
          %1546 = vmax.xlane.f32.xlu0 %v1517
          %v1547 = vpop.xlane.xlu0 %1546
          %1548 = vmax.xlane.f32.xlu0 %v1518
          %v1549 = vpop.xlane.xlu0 %1548
          %1550 = vmax.xlane.f32.xlu0 %v1519
          %v1551 = vpop.xlane.xlu0 %1550
          %v1552 = vsub.f32 %v1504, %v1521
          %v1553 = vsub.f32 %v1505, %v1523
          %v1554 = vsub.f32 %v1506, %v1525
          %v1555 = vsub.f32 %v1507, %v1527
          %v1556 = vsub.f32 %v1508, %v1529
          %v1557 = vsub.f32 %v1509, %v1531
          %v1558 = vsub.f32 %v1510, %v1533
          %v1559 = vsub.f32 %v1511, %v1535
          %v1560 = vsub.f32 %v1512, %v1537
          %v1561 = vsub.f32 %v1513, %v1539
          %v1562 = vsub.f32 %v1514, %v1541
          %v1563 = vsub.f32 %v1515, %v1543
          %v1564 = vsub.f32 %v1516, %v1545
          %v1565 = vsub.f32 %v1517, %v1547
          %v1566 = vsub.f32 %v1518, %v1549
          %v1567 = vsub.f32 %v1519, %v1551
          %v1568 = vmul.f32 %v1552, 1.442695
          %v1569 = vpow.pop %v1568
          %v1570 = vmul.f32 %v1553, 1.442695
          %v1571 = vpow.pop %v1570
          %v1572 = vmul.f32 %v1554, 1.442695
          %v1573 = vpow.pop %v1572
          %v1574 = vmul.f32 %v1555, 1.442695
          %v1575 = vpow.pop %v1574
          %v1576 = vmul.f32 %v1556, 1.442695
          %v1577 = vpow.pop %v1576
          %v1578 = vmul.f32 %v1557, 1.442695
          %v1579 = vpow.pop %v1578
          %v1580 = vmul.f32 %v1558, 1.442695
          %v1581 = vpow.pop %v1580
          %v1582 = vmul.f32 %v1559, 1.442695
          %v1583 = vpow.pop %v1582
          %v1584 = vmul.f32 %v1560, 1.442695
          %v1585 = vpow.pop %v1584
          %v1586 = vmul.f32 %v1561, 1.442695
          %v1587 = vpow.pop %v1586
          %v1588 = vmul.f32 %v1562, 1.442695
          %v1589 = vpow.pop %v1588
          %v1590 = vmul.f32 %v1563, 1.442695
          %v1591 = vpow.pop %v1590
          %v1592 = vmul.f32 %v1564, 1.442695
          %v1593 = vpow.pop %v1592
          %v1594 = vmul.f32 %v1565, 1.442695
          %v1595 = vpow.pop %v1594
          %v1596 = vmul.f32 %v1566, 1.442695
          %v1597 = vpow.pop %v1596
          %v1598 = vmul.f32 %v1567, 1.442695
          %v1599 = vpow.pop %v1598
          %v1600 = vsel %vm1503, %v1569, 0.0
          %v1601 = vsel %vm1503, %v1571, 0.0
          %v1602 = vsel %vm1503, %v1573, 0.0
          %v1603 = vsel %vm1503, %v1575, 0.0
          %v1604 = vsel %vm1503, %v1577, 0.0
          %v1605 = vsel %vm1503, %v1579, 0.0
          %v1606 = vsel %vm1503, %v1581, 0.0
          %v1607 = vsel %vm1503, %v1583, 0.0
          %v1608 = vsel %vm1503, %v1585, 0.0
          %v1609 = vsel %vm1503, %v1587, 0.0
          %v1610 = vsel %vm1503, %v1589, 0.0
          %v1611 = vsel %vm1503, %v1591, 0.0
          %v1612 = vsel %vm1503, %v1593, 0.0
          %v1613 = vsel %vm1503, %v1595, 0.0
          %v1614 = vsel %vm1503, %v1597, 0.0
          %v1615 = vsel %vm1503, %v1599, 0.0
          %1616 = vadd.xlane.f32.xlu0 %v1600
          %v1617 = vpop.xlane.xlu0 %1616
          %1618 = vadd.xlane.f32.xlu0 %v1601
          %v1619 = vpop.xlane.xlu0 %1618
          %1620 = vadd.xlane.f32.xlu0 %v1602
          %v1621 = vpop.xlane.xlu0 %1620
          %1622 = vadd.xlane.f32.xlu0 %v1603
          %v1623 = vpop.xlane.xlu0 %1622
          %1624 = vadd.xlane.f32.xlu0 %v1604
          %v1625 = vpop.xlane.xlu0 %1624
          %1626 = vadd.xlane.f32.xlu0 %v1605
          %v1627 = vpop.xlane.xlu0 %1626
          %1628 = vadd.xlane.f32.xlu0 %v1606
          %v1629 = vpop.xlane.xlu0 %1628
          %1630 = vadd.xlane.f32.xlu0 %v1607
          %v1631 = vpop.xlane.xlu0 %1630
          %1632 = vadd.xlane.f32.xlu0 %v1608
          %v1633 = vpop.xlane.xlu0 %1632
          %1634 = vadd.xlane.f32.xlu0 %v1609
          %v1635 = vpop.xlane.xlu0 %1634
          %1636 = vadd.xlane.f32.xlu0 %v1610
          %v1637 = vpop.xlane.xlu0 %1636
          %1638 = vadd.xlane.f32.xlu0 %v1611
          %v1639 = vpop.xlane.xlu0 %1638
          %1640 = vadd.xlane.f32.xlu0 %v1612
          %v1641 = vpop.xlane.xlu0 %1640
          %1642 = vadd.xlane.f32.xlu0 %v1613
          %v1643 = vpop.xlane.xlu0 %1642
          %1644 = vadd.xlane.f32.xlu0 %v1614
          %v1645 = vpop.xlane.xlu0 %1644
          %1646 = vadd.xlane.f32.xlu0 %v1615
          %v1647 = vpop.xlane.xlu0 %1646
          %v1648 = vlog2.pop %v1617
          %v1649 = vmul.f32 %v1648, 0.6931472
          %v1650 = vlog2.pop %v1619
          %v1651 = vmul.f32 %v1650, 0.6931472
          %v1652 = vlog2.pop %v1621
          %v1653 = vmul.f32 %v1652, 0.6931472
          %v1654 = vlog2.pop %v1623
          %v1655 = vmul.f32 %v1654, 0.6931472
          %v1656 = vlog2.pop %v1625
          %v1657 = vmul.f32 %v1656, 0.6931472
          %v1658 = vlog2.pop %v1627
          %v1659 = vmul.f32 %v1658, 0.6931472
          %v1660 = vlog2.pop %v1629
          %v1661 = vmul.f32 %v1660, 0.6931472
          %v1662 = vlog2.pop %v1631
          %v1663 = vmul.f32 %v1662, 0.6931472
          %v1664 = vlog2.pop %v1633
          %v1665 = vmul.f32 %v1664, 0.6931472
          %v1666 = vlog2.pop %v1635
          %v1667 = vmul.f32 %v1666, 0.6931472
          %v1668 = vlog2.pop %v1637
          %v1669 = vmul.f32 %v1668, 0.6931472
          %v1670 = vlog2.pop %v1639
          %v1671 = vmul.f32 %v1670, 0.6931472
          %v1672 = vlog2.pop %v1641
          %v1673 = vmul.f32 %v1672, 0.6931472
          %v1674 = vlog2.pop %v1643
          %v1675 = vmul.f32 %v1674, 0.6931472
          %v1676 = vlog2.pop %v1645
          %v1677 = vmul.f32 %v1676, 0.6931472
          %v1678 = vlog2.pop %v1647
          %v1679 = vmul.f32 %v1678, 0.6931472
          %v1680 = vsub.f32 %v1552, %v1649
          %v1681 = vsub.f32 %v1553, %v1651
          %v1682 = vsub.f32 %v1554, %v1653
          %v1683 = vsub.f32 %v1555, %v1655
          %v1684 = vsub.f32 %v1556, %v1657
          %v1685 = vsub.f32 %v1557, %v1659
          %v1686 = vsub.f32 %v1558, %v1661
          %v1687 = vsub.f32 %v1559, %v1663
          %v1688 = vsub.f32 %v1560, %v1665
          %v1689 = vsub.f32 %v1561, %v1667
          %v1690 = vsub.f32 %v1562, %v1669
          %v1691 = vsub.f32 %v1563, %v1671
          %v1692 = vsub.f32 %v1564, %v1673
          %v1693 = vsub.f32 %v1565, %v1675
          %v1694 = vsub.f32 %v1566, %v1677
          %v1695 = vsub.f32 %v1567, %v1679
          %1696 = vst [vmem:[%s421] sm:$0xff] %v1680
          %1697 = vst [vmem:[%s421 + $0x8] sm:$0xff] %v1681
          %1698 = vst [vmem:[%s421 + $0x10] sm:$0xff] %v1682
          %1699 = vst [vmem:[%s421 + $0x18] sm:$0xff] %v1683
          %1700 = vst [vmem:[%s421 + $0x20] sm:$0xff] %v1684
          %1701 = vst [vmem:[%s421 + $0x28] sm:$0xff] %v1685
          %1702 = vst [vmem:[%s421 + $0x30] sm:$0xff] %v1686
          %1703 = vst [vmem:[%s421 + $0x38] sm:$0xff] %v1687
          %1704 = vst [vmem:[%s421 + $0x40] sm:$0xff] %v1688
          %1705 = vst [vmem:[%s421 + $0x48] sm:$0xff] %v1689
          %1706 = vst [vmem:[%s421 + $0x50] sm:$0xff] %v1690
          %1707 = vst [vmem:[%s421 + $0x58] sm:$0xff] %v1691
          %1708 = vst [vmem:[%s421 + $0x60] sm:$0xff] %v1692
          %1709 = vst [vmem:[%s421 + $0x68] sm:$0xff] %v1693
          %1710 = vst [vmem:[%s421 + $0x70] sm:$0xff] %v1694
          %1711 = vst [vmem:[%s421 + $0x78] sm:$0xff] %v1695
        $region92: #{net_forward.1} parent=43 // pred_fallthru
          _
        %s1712 = sand.u32 %s221, 1
        %s1713 = scalar_lea.sflag [#allocation7], %s1712
        %s1714 = sand.u32 %s221, 1
        %s1715 = smul.addr %s1714, 128
        %s1716 = scalar_lea.vmem [#allocation16], %s1715
        // Predicated region
        $region93: #{net_forward.1} parent=43 // pred_check
          %p1717 = pneg %p231
        $region94: #{net_forward.1} parent=43 // pred_check_branch
          %1719 = sbr.rel (%p1717) target = $region96
        $region95: #{net_forward.1} parent=43 // pred_region
          %p1720 = scmp.eq.s32.totalorder %s33, 1
          %p1721 = scmp.eq.s32.totalorder %s34, 4
          %p1722 = pnand %p1720, %p1721
          %p1723 = pneg %p1722
          %s1724 = scalar_select %p1723, 1, 0
          %s1725 = smul.u32 %s35, %s1724
          %s1726 = smul.u32 16, %s1725
          %s1728 = ssub.s32 2048, 2048
          %1729 = vsyncadd %s1713, %s1728
          %s1730 = smul.addr %s1726, 128
          %s1731 = scalar_lea.hbm %s6, %s1730
          %s1732 = sshll.u32 %s1716, 4
          %s1733 = int_to_ptr.vmem [resolvable:$true] %s1732
          %1738 = dma.vmem_to_hbm [thread:$0]  %s1733, 2048, %s1731, %s1713, 128, 128, 8
        $region96: #{net_forward.1} parent=43 // pred_fallthru
          _
      $region44: #{net_forward.1} parent=5 // pred_fallthru
        _
      %p1739 = scmp.le.s32.totalorder 2, %s23
      // Predicated region
      $region97: #{net_forward.1} parent=5 // pred_check
        %p1740 = pneg %p1739
      $region98: #{net_forward.1} parent=5 // pred_check_branch
        %1742 = sbr.rel (%p1740) target = $region100
      $region99: #{net_forward.1} parent=5 // pred_region
        %s1743 = ssub.s32 %s23, 2
        // Predicated region
        $region101: #{net_forward.1} parent=99 // pred_check
          %p1744 = pneg %p237
        $region102: #{net_forward.1} parent=99 // pred_check_branch
          %1746 = sbr.rel (%p1744) target = $region104
        $region103: #{net_forward.1} parent=99 // pred_region
          %s1747 = sand.u32 %s222, 1
          %s1748 = scalar_lea.sflag [#allocation7], %s1747
          %s1749 = sand.u32 %s222, 1
          %s1750 = smul.addr %s1749, 128
          %s1751 = scalar_lea.vmem [#allocation16], %s1750
          %1752 = dma.done %s1748, 2048
        $region104: #{net_forward.1} parent=99 // pred_fallthru
          _
      $region100: #{net_forward.1} parent=5 // pred_fallthru
        _
    $region6: #{net_forward.1} parent=1 // loop_footer
      %s27 = sadd.s32 1, %s23
    $region7: #{net_forward.1} parent=1 // loop_footer_branch
      %22 = sbr.rel target = $region3
    $region8: #{net_forward.1} parent=1 // loop_exit
      _
    %1753 = vsyncpa [#allocation6], 1
    %s1754 = scalar_lea.sflag [#allocation6], 1
    %1755 = vsyncpa %s1754, 1
    %1756 = vsyncpa [#allocation9], 1
    %s1757 = scalar_lea.sflag [#allocation9], 1
    %1758 = vsyncpa %s1757, 1
    %1759 = vsyncpa [#allocation12], 1
    %1760 = vsyncpa [#allocation15], 1
    %1761 = vsyncpa [#allocation7], 1
    %s1762 = scalar_lea.sflag [#allocation7], 1
    %1763 = vsyncpa %s1762, 1

</llo_original>
